<compile_context>
chip_gen: v7x
topology: tpu7x:2x2x1
jax: 0.10.0
libtpu: 0.0.40
codegen_flags: <defaults>
</compile_context>

<pallas_src>
import functools

import jax
import jax.numpy as jnp
from jax import lax
from jax.experimental import pallas as pl
from jax.experimental.pallas import tpu as pltpu


def _round_up(x, m):
    return (x + m - 1) // m * m


def _make_fused_kernel(depth, C, T, F, lorder, padL, padR, eps):
    twidth = 2 * lorder - 1
    Lout = T * F
    width = padL + Lout + padR

    def kernel(x_ref, w_ref, aff_ref, o_ref, skip_ref, conv_ref):
        # One-time init: zero the dense-skip scratch.  Halo lanes stay zero for
        # the whole kernel; every interior is overwritten each grid step before
        # it is read.  (Requires the batch axis to be "arbitrary": sequential
        # per core, so the once-initialised scratch is reused across steps.)
        @pl.when(pl.program_id(0) == 0)
        def _():
            skip_ref[...] = jnp.zeros(skip_ref.shape, skip_ref.dtype)

        # Drop this batch element's (unpadded) input into the x-slab interior.
        skip_ref[(depth - 1) * C:depth * C, padL:padL + Lout] = x_ref[0]

        w_off = 0
        for i in range(depth):
            g = i + 1                       # input channels per group
            dil = 2 ** i
            pad_i = dil * (lorder - 1)      # per-layer temporal padding
            base = (depth - 1 - i) * C      # first skip row this layer reads

            # ---- grouped dilated conv (cross-correlation along T) ----
            # One contiguous VMEM load of the whole slab; each tap is a static
            # in-register lane slice of that value, 1 FMA per tap per row.
            slab = skip_ref[base:base + g * C, :]            # (g*C, width)
            wrow = w_ref[w_off:w_off + g * C, :]             # (g*C, twidth)
            acc = None
            for k in range(twidth):
                m = padL + (k * dil - pad_i) * F             # lane shift of tap k
                tap = slab[:, m:m + Lout]                    # (g*C, Lout)
                term = wrow[:, k:k + 1] * tap
                acc = term if acc is None else acc + term

            # ---- group-sum: conv[c] = sum_j acc[c*g + j] (exact f32 VPU adds) ----
            if g == 1:
                conv = acc
            else:
                for c in range(C):
                    row = acc[c * g:c * g + 1, :]
                    for j in range(1, g):
                        row = row + acc[c * g + j:c * g + j + 1, :]
                    conv_ref[c:c + 1, :] = row
                conv = conv_ref[...]

            # ---- InstanceNorm2d(affine): two-pass stats, biased variance ----
            inv_n = 1.0 / float(Lout)
            mean = jnp.sum(conv, axis=1, keepdims=True) * inv_n
            cen = conv - mean
            var = jnp.sum(cen * cen, axis=1, keepdims=True) * inv_n
            xhat = cen * lax.rsqrt(var + eps)
            aff = aff_ref[i * C:(i + 1) * C, :]              # cols: gamma, beta, alpha
            y = aff[:, 0:1] * xhat + aff[:, 1:2]
            # ---- PReLU (per-channel slope) ----
            y = jnp.where(y >= 0.0, y, aff[:, 2:3] * y)

            if i < depth - 1:
                slab_out = (depth - 2 - i) * C
                skip_ref[slab_out:slab_out + C, padL:padL + Lout] = y
            else:
                o_ref[0] = y

            w_off += g * C

    return kernel


def dilated_dense_net(x, params, *, depth, lorder):
    """Forward of DilatedDenseNet. Returns the last layer's output (B, C, T, F)."""
    B, C, T, F = x.shape
    twidth = 2 * lorder - 1
    pad_max = (2 ** (depth - 1)) * (lorder - 1)     # largest per-layer T padding
    Lout = T * F
    padL = _round_up(pad_max * F, 128)              # 128-aligned left halo
    padR = pad_max * F
    width = padL + Lout + padR
    eps = 1e-5

    x_flat = x.astype(jnp.float32).reshape(B, C, Lout)

    # Pack all per-layer parameters into two small operands.
    w_rows, aff_rows = [], []
    for i in range(depth):
        w, gamma, beta, alpha = params[i]
        g = i + 1
        assert w.shape == (C, g, twidth)
        # Row c*g + j holds w[c, j, :]  (matches the slab's skip-channel order).
        w_rows.append(w.reshape(C * g, twidth).astype(jnp.float32))
        aff_rows.append(jnp.stack([gamma, beta, alpha], axis=1).astype(jnp.float32))
    w_all = jnp.concatenate(w_rows, axis=0)          # (C * depth*(depth+1)/2, twidth)
    aff_all = jnp.concatenate(aff_rows, axis=0)      # (depth*C, 3)

    kernel = _make_fused_kernel(depth, C, T, F, lorder, padL, padR, eps)

    # Explicit VMEM budget: scratch + bounce + double-buffered in/out + params.
    vmem_bytes = 4 * (depth * C * width              # dense-skip scratch
                      + C * Lout                     # conv bounce scratch
                      + 2 * C * Lout                 # input window (x2 buffers)
                      + 2 * C * Lout                 # output window (x2 buffers)
                      + 2 * w_all.shape[0] * 128     # packed weights (lane-padded)
                      + 2 * depth * C * 128)         # packed affine (lane-padded)
    vmem_limit = min(64 * 1024 * 1024, max(32 * 1024 * 1024, 2 * vmem_bytes))

    out = pl.pallas_call(
        kernel,
        out_shape=jax.ShapeDtypeStruct((B, C, Lout), jnp.float32),
        grid=(B,),
        in_specs=[
            pl.BlockSpec((1, C, Lout), lambda b: (b, 0, 0)),   # x (unpadded)
            pl.BlockSpec(w_all.shape, lambda b: (0, 0)),       # packed conv weights
            pl.BlockSpec(aff_all.shape, lambda b: (0, 0)),     # packed gamma/beta/alpha
        ],
        out_specs=pl.BlockSpec((1, C, Lout), lambda b: (b, 0, 0)),
        scratch_shapes=[
            pltpu.VMEM((depth * C, width), jnp.float32),       # dense-skip scratch
            pltpu.VMEM((C, Lout), jnp.float32),                # group-sum bounce
        ],
        compiler_params=pltpu.CompilerParams(
            # "arbitrary": batch steps reuse the once-initialised scratch halo.
            dimension_semantics=("arbitrary",),
            vmem_limit_bytes=vmem_limit,
        ),
    )(x_flat, w_all, aff_all)

    return out.reshape(B, C, T, F)


# ---------------- pure-JAX reference (for correctness check) ----------------
def _ref_layer(skip, w, gamma, beta, alpha, *, dil, lorder, eps=1e-5):
    C = w.shape[0]
    pad_len = lorder + (dil - 1) * (lorder - 1) - 1
    xp = jnp.pad(skip, ((0, 0), (0, 0), (pad_len, pad_len), (0, 0)))
    conv = lax.conv_general_dilated(
        xp, w[..., None],                      # (C, i+1, twidth, 1)
        window_strides=(1, 1), padding='VALID',
        rhs_dilation=(dil, 1), feature_group_count=C,
        dimension_numbers=('NCHW', 'OIHW', 'NCHW'),
        precision=lax.Precision.HIGHEST)
    mean = conv.mean(axis=(2, 3), keepdims=True)
    var = ((conv - mean) ** 2).mean(axis=(2, 3), keepdims=True)
    xh = (conv - mean) / jnp.sqrt(var + eps)
    y = gamma[None, :, None, None] * xh + beta[None, :, None, None]
    return jnp.where(y >= 0, y, alpha[None, :, None, None] * y)


def _ref_net(x, params, *, depth, lorder):
    skip = x
    out = None
    for i in range(depth):
        w, gamma, beta, alpha = params[i]
        out = _ref_layer(skip, w, gamma, beta, alpha, dil=2 ** i, lorder=lorder)
        skip = jnp.concatenate([out, skip], axis=1)
    return out


if __name__ == "__main__":
    depth, lorder, C = 4, 3, 8            # small: in_channels=8, twidth=5
    B, T, F = 2, 16, 16
    twidth = 2 * lorder - 1

    key = jax.random.PRNGKey(0)
    keys = jax.random.split(key, depth * 4 + 1)
    x = jax.random.normal(keys[0], (B, C, T, F), jnp.float32)

    params = []
    for i in range(depth):
        kw, kg, kb, _ = keys[1 + 4 * i: 1 + 4 * i + 4]
        w = 0.2 * jax.random.normal(kw, (C, i + 1, twidth), jnp.float32)   # Conv2d weight (O, I/g, kh), kw=1 dropped
        gamma = 1.0 + 0.1 * jax.random.normal(kg, (C,), jnp.float32)       # InstanceNorm2d weight
        beta = 0.1 * jax.random.normal(kb, (C,), jnp.float32)              # InstanceNorm2d bias
        alpha = jnp.full((C,), 0.25, jnp.float32)                          # PReLU default slope
        params.append((w, gamma, beta, alpha))

    fwd = jax.jit(functools.partial(dilated_dense_net, depth=depth, lorder=lorder))
    out = fwd(x, params)
    out = jax.block_until_ready(out)

    ref = _ref_net(x, params, depth=depth, lorder=lorder)
    assert out.shape == (B, C, T, F)
    err = float(jnp.max(jnp.abs(out - ref)))
    assert jnp.allclose(out, ref, atol=1e-4, rtol=1e-4), err

    print("KERNEL_OK")
</pallas_src>

<mosaic_0001>
module attributes {stable_mosaic.version = 11 : i64} {
  func.func @kernel(%arg0: i32, %arg1: memref<1x8x256xf32, #tpu.memory_space<vmem>>, %arg2: memref<80x5xf32, #tpu.memory_space<vmem>>, %arg3: memref<32x3xf32, #tpu.memory_space<vmem>>, %arg4: memref<1x8x256xf32, #tpu.memory_space<vmem>>, %arg5: memref<32x768xf32, #tpu.memory_space<vmem>>, %arg6: memref<8x256xf32, #tpu.memory_space<vmem>>) attributes {dimension_semantics = [#tpu.dimension_semantics<arbitrary>], iteration_bounds = array<i64: 2>, scalar_prefetch = 0 : i64, scratch_operands = 2 : i64, tpu.core_type = #tpu.core_type<tc>, window_params = [{transform_indices = @transform_0, window_bounds = array<i64: 1, 8, 256>}, {pipeline_mode = #tpu.pipeline_mode<synchronous>, transform_indices = @transform_1, window_bounds = array<i64: 80, 5>}, {pipeline_mode = #tpu.pipeline_mode<synchronous>, transform_indices = @transform_2, window_bounds = array<i64: 32, 3>}, {transform_indices = @transform_3, window_bounds = array<i64: 1, 8, 256>}]} {
    %c0_i32 = arith.constant 0 : i32
    %0 = arith.cmpi eq, %arg0, %c0_i32 : i32
    %1 = arith.extui %0 : i1 to i32
    %c0_i32_0 = arith.constant 0 : i32
    %2 = arith.cmpi ne, %1, %c0_i32_0 : i32
    scf.if %2 {
      %cst_103 = arith.constant 0.000000e+00 : f32
      %379 = vector.broadcast %cst_103 : f32 to vector<32x768xf32>
      %c0_104 = arith.constant 0 : index
      %c0_105 = arith.constant 0 : index
      %380 = vector.load %arg5[%c0_104, %c0_105] : memref<32x768xf32, #tpu.memory_space<vmem>>, vector<32x768xf32>
      tpu.vector_store %arg5[%c0_104, %c0_105], %379 {strides = array<i32>} : memref<32x768xf32, #tpu.memory_space<vmem>>, vector<32x768xf32>,
    } else {
    }
    %c0 = arith.constant 0 : index
    %c0_1 = arith.constant 0 : index
    %c0_2 = arith.constant 0 : index
    %3 = vector.load %arg1[%c0, %c0_1, %c0_2] : memref<1x8x256xf32, #tpu.memory_space<vmem>>, vector<1x8x256xf32>
    %4 = vector.shape_cast %3 : vector<1x8x256xf32> to vector<8x256xf32>
    %c24 = arith.constant 24 : index
    %c256 = arith.constant 256 : index
    %5 = vector.load %arg5[%c24, %c256] : memref<32x768xf32, #tpu.memory_space<vmem>>, vector<8x256xf32>
    tpu.vector_store %arg5[%c24, %c256], %4 {strides = array<i32>} : memref<32x768xf32, #tpu.memory_space<vmem>>, vector<8x256xf32>,
    %c24_3 = arith.constant 24 : index
    %c0_4 = arith.constant 0 : index
    %6 = vector.load %arg5[%c24_3, %c0_4] : memref<32x768xf32, #tpu.memory_space<vmem>>, vector<8x768xf32>
    %c0_5 = arith.constant 0 : index
    %c0_6 = arith.constant 0 : index
    %7 = vector.load %arg2[%c0_5, %c0_6] : memref<80x5xf32, #tpu.memory_space<vmem>>, vector<8x5xf32>
    %8 = vector.extract_strided_slice %6 {offsets = [0, 224], sizes = [8, 256], strides = [1, 1]} : vector<8x768xf32> to vector<8x256xf32>
    %9 = vector.extract_strided_slice %7 {offsets = [0, 0], sizes = [8, 1], strides = [1, 1]} : vector<8x5xf32> to vector<8x1xf32>
    %10 = vector.broadcast %9 : vector<8x1xf32> to vector<8x256xf32>
    %11 = arith.mulf %10, %8 : vector<8x256xf32>
    %12 = vector.extract_strided_slice %6 {offsets = [0, 240], sizes = [8, 256], strides = [1, 1]} : vector<8x768xf32> to vector<8x256xf32>
    %13 = vector.extract_strided_slice %7 {offsets = [0, 1], sizes = [8, 1], strides = [1, 1]} : vector<8x5xf32> to vector<8x1xf32>
    %14 = vector.broadcast %13 : vector<8x1xf32> to vector<8x256xf32>
    %15 = arith.mulf %14, %12 : vector<8x256xf32>
    %16 = arith.addf %11, %15 : vector<8x256xf32>
    %17 = vector.extract_strided_slice %6 {offsets = [0, 256], sizes = [8, 256], strides = [1, 1]} : vector<8x768xf32> to vector<8x256xf32>
    %18 = vector.extract_strided_slice %7 {offsets = [0, 2], sizes = [8, 1], strides = [1, 1]} : vector<8x5xf32> to vector<8x1xf32>
    %19 = vector.broadcast %18 : vector<8x1xf32> to vector<8x256xf32>
    %20 = arith.mulf %19, %17 : vector<8x256xf32>
    %21 = arith.addf %16, %20 : vector<8x256xf32>
    %22 = vector.extract_strided_slice %6 {offsets = [0, 272], sizes = [8, 256], strides = [1, 1]} : vector<8x768xf32> to vector<8x256xf32>
    %23 = vector.extract_strided_slice %7 {offsets = [0, 3], sizes = [8, 1], strides = [1, 1]} : vector<8x5xf32> to vector<8x1xf32>
    %24 = vector.broadcast %23 : vector<8x1xf32> to vector<8x256xf32>
    %25 = arith.mulf %24, %22 : vector<8x256xf32>
    %26 = arith.addf %21, %25 : vector<8x256xf32>
    %27 = vector.extract_strided_slice %6 {offsets = [0, 288], sizes = [8, 256], strides = [1, 1]} : vector<8x768xf32> to vector<8x256xf32>
    %28 = vector.extract_strided_slice %7 {offsets = [0, 4], sizes = [8, 1], strides = [1, 1]} : vector<8x5xf32> to vector<8x1xf32>
    %29 = vector.broadcast %28 : vector<8x1xf32> to vector<8x256xf32>
    %30 = arith.mulf %29, %27 : vector<8x256xf32>
    %31 = arith.addf %26, %30 : vector<8x256xf32>
    %cst = arith.constant dense<0.000000e+00> : vector<8xf32>
    %32 = vector.multi_reduction <add>, %31, %cst [1] : vector<8x256xf32> to vector<8xf32>
    %33 = vector.shape_cast %32 : vector<8xf32> to vector<8x1xf32>
    %cst_7 = arith.constant 3.906250e-03 : f32
    %34 = vector.broadcast %cst_7 : f32 to vector<8x1xf32>
    %35 = arith.mulf %33, %34 : vector<8x1xf32>
    %36 = vector.broadcast %35 : vector<8x1xf32> to vector<8x256xf32>
    %37 = arith.subf %31, %36 : vector<8x256xf32>
    %38 = arith.mulf %37, %37 : vector<8x256xf32>
    %cst_8 = arith.constant dense<0.000000e+00> : vector<8xf32>
    %39 = vector.multi_reduction <add>, %38, %cst_8 [1] : vector<8x256xf32> to vector<8xf32>
    %40 = vector.shape_cast %39 : vector<8xf32> to vector<8x1xf32>
    %cst_9 = arith.constant 3.906250e-03 : f32
    %41 = vector.broadcast %cst_9 : f32 to vector<8x1xf32>
    %42 = arith.mulf %40, %41 : vector<8x1xf32>
    %cst_10 = arith.constant 9.99999974E-6 : f32
    %43 = vector.broadcast %cst_10 : f32 to vector<8x1xf32>
    %44 = arith.addf %42, %43 : vector<8x1xf32>
    %45 = math.rsqrt %44 : vector<8x1xf32>
    %46 = vector.broadcast %45 : vector<8x1xf32> to vector<8x256xf32>
    %47 = arith.mulf %37, %46 : vector<8x256xf32>
    %c0_11 = arith.constant 0 : index
    %c0_12 = arith.constant 0 : index
    %48 = vector.load %arg3[%c0_11, %c0_12] : memref<32x3xf32, #tpu.memory_space<vmem>>, vector<8x3xf32>
    %49 = vector.extract_strided_slice %48 {offsets = [0, 0], sizes = [8, 1], strides = [1, 1]} : vector<8x3xf32> to vector<8x1xf32>
    %50 = vector.broadcast %49 : vector<8x1xf32> to vector<8x256xf32>
    %51 = arith.mulf %50, %47 : vector<8x256xf32>
    %52 = vector.extract_strided_slice %48 {offsets = [0, 1], sizes = [8, 1], strides = [1, 1]} : vector<8x3xf32> to vector<8x1xf32>
    %53 = vector.broadcast %52 : vector<8x1xf32> to vector<8x256xf32>
    %54 = arith.addf %51, %53 : vector<8x256xf32>
    %cst_13 = arith.constant 0.000000e+00 : f32
    %55 = vector.broadcast %cst_13 : f32 to vector<8x256xf32>
    %56 = arith.cmpf oge, %54, %55 : vector<8x256xf32>
    %57 = vector.extract_strided_slice %48 {offsets = [0, 2], sizes = [8, 1], strides = [1, 1]} : vector<8x3xf32> to vector<8x1xf32>
    %58 = vector.broadcast %57 : vector<8x1xf32> to vector<8x256xf32>
    %59 = arith.mulf %58, %54 : vector<8x256xf32>
    %60 = arith.select %56, %54, %59 : vector<8x256xi1>, vector<8x256xf32>
    %c16 = arith.constant 16 : index
    %c256_14 = arith.constant 256 : index
    %61 = vector.load %arg5[%c16, %c256_14] : memref<32x768xf32, #tpu.memory_space<vmem>>, vector<8x256xf32>
    tpu.vector_store %arg5[%c16, %c256_14], %60 {strides = array<i32>} : memref<32x768xf32, #tpu.memory_space<vmem>>, vector<8x256xf32>,
    %c16_15 = arith.constant 16 : index
    %c0_16 = arith.constant 0 : index
    %62 = vector.load %arg5[%c16_15, %c0_16] : memref<32x768xf32, #tpu.memory_space<vmem>>, vector<16x768xf32>
    %c8 = arith.constant 8 : index
    %c0_17 = arith.constant 0 : index
    %63 = vector.load %arg2[%c8, %c0_17] : memref<80x5xf32, #tpu.memory_space<vmem>>, vector<16x5xf32>
    %64 = vector.extract_strided_slice %62 {offsets = [0, 192], sizes = [16, 256], strides = [1, 1]} : vector<16x768xf32> to vector<16x256xf32>
    %65 = vector.extract_strided_slice %63 {offsets = [0, 0], sizes = [16, 1], strides = [1, 1]} : vector<16x5xf32> to vector<16x1xf32>
    %66 = vector.broadcast %65 : vector<16x1xf32> to vector<16x256xf32>
    %67 = arith.mulf %66, %64 : vector<16x256xf32>
    %68 = vector.extract_strided_slice %62 {offsets = [0, 224], sizes = [16, 256], strides = [1, 1]} : vector<16x768xf32> to vector<16x256xf32>
    %69 = vector.extract_strided_slice %63 {offsets = [0, 1], sizes = [16, 1], strides = [1, 1]} : vector<16x5xf32> to vector<16x1xf32>
    %70 = vector.broadcast %69 : vector<16x1xf32> to vector<16x256xf32>
    %71 = arith.mulf %70, %68 : vector<16x256xf32>
    %72 = arith.addf %67, %71 : vector<16x256xf32>
    %73 = vector.extract_strided_slice %62 {offsets = [0, 256], sizes = [16, 256], strides = [1, 1]} : vector<16x768xf32> to vector<16x256xf32>
    %74 = vector.extract_strided_slice %63 {offsets = [0, 2], sizes = [16, 1], strides = [1, 1]} : vector<16x5xf32> to vector<16x1xf32>
    %75 = vector.broadcast %74 : vector<16x1xf32> to vector<16x256xf32>
    %76 = arith.mulf %75, %73 : vector<16x256xf32>
    %77 = arith.addf %72, %76 : vector<16x256xf32>
    %78 = vector.extract_strided_slice %62 {offsets = [0, 288], sizes = [16, 256], strides = [1, 1]} : vector<16x768xf32> to vector<16x256xf32>
    %79 = vector.extract_strided_slice %63 {offsets = [0, 3], sizes = [16, 1], strides = [1, 1]} : vector<16x5xf32> to vector<16x1xf32>
    %80 = vector.broadcast %79 : vector<16x1xf32> to vector<16x256xf32>
    %81 = arith.mulf %80, %78 : vector<16x256xf32>
    %82 = arith.addf %77, %81 : vector<16x256xf32>
    %83 = vector.extract_strided_slice %62 {offsets = [0, 320], sizes = [16, 256], strides = [1, 1]} : vector<16x768xf32> to vector<16x256xf32>
    %84 = vector.extract_strided_slice %63 {offsets = [0, 4], sizes = [16, 1], strides = [1, 1]} : vector<16x5xf32> to vector<16x1xf32>
    %85 = vector.broadcast %84 : vector<16x1xf32> to vector<16x256xf32>
    %86 = arith.mulf %85, %83 : vector<16x256xf32>
    %87 = arith.addf %82, %86 : vector<16x256xf32>
    %88 = vector.extract_strided_slice %87 {offsets = [0, 0], sizes = [1, 256], strides = [1, 1]} : vector<16x256xf32> to vector<1x256xf32>
    %89 = vector.extract_strided_slice %87 {offsets = [1, 0], sizes = [1, 256], strides = [1, 1]} : vector<16x256xf32> to vector<1x256xf32>
    %90 = arith.addf %88, %89 : vector<1x256xf32>
    %c0_18 = arith.constant 0 : index
    %c0_19 = arith.constant 0 : index
    %91 = vector.load %arg6[%c0_18, %c0_19] : memref<8x256xf32, #tpu.memory_space<vmem>>, vector<1x256xf32>
    tpu.vector_store %arg6[%c0_18, %c0_19], %90 {strides = array<i32>} : memref<8x256xf32, #tpu.memory_space<vmem>>, vector<1x256xf32>,
    %92 = vector.extract_strided_slice %87 {offsets = [2, 0], sizes = [1, 256], strides = [1, 1]} : vector<16x256xf32> to vector<1x256xf32>
    %93 = vector.extract_strided_slice %87 {offsets = [3, 0], sizes = [1, 256], strides = [1, 1]} : vector<16x256xf32> to vector<1x256xf32>
    %94 = arith.addf %92, %93 : vector<1x256xf32>
    %c1 = arith.constant 1 : index
    %c0_20 = arith.constant 0 : index
    %95 = vector.load %arg6[%c1, %c0_20] : memref<8x256xf32, #tpu.memory_space<vmem>>, vector<1x256xf32>
    tpu.vector_store %arg6[%c1, %c0_20], %94 {strides = array<i32>} : memref<8x256xf32, #tpu.memory_space<vmem>>, vector<1x256xf32>,
    %96 = vector.extract_strided_slice %87 {offsets = [4, 0], sizes = [1, 256], strides = [1, 1]} : vector<16x256xf32> to vector<1x256xf32>
    %97 = vector.extract_strided_slice %87 {offsets = [5, 0], sizes = [1, 256], strides = [1, 1]} : vector<16x256xf32> to vector<1x256xf32>
    %98 = arith.addf %96, %97 : vector<1x256xf32>
    %c2 = arith.constant 2 : index
    %c0_21 = arith.constant 0 : index
    %99 = vector.load %arg6[%c2, %c0_21] : memref<8x256xf32, #tpu.memory_space<vmem>>, vector<1x256xf32>
    tpu.vector_store %arg6[%c2, %c0_21], %98 {strides = array<i32>} : memref<8x256xf32, #tpu.memory_space<vmem>>, vector<1x256xf32>,
    %100 = vector.extract_strided_slice %87 {offsets = [6, 0], sizes = [1, 256], strides = [1, 1]} : vector<16x256xf32> to vector<1x256xf32>
    %101 = vector.extract_strided_slice %87 {offsets = [7, 0], sizes = [1, 256], strides = [1, 1]} : vector<16x256xf32> to vector<1x256xf32>
    %102 = arith.addf %100, %101 : vector<1x256xf32>
    %c3 = arith.constant 3 : index
    %c0_22 = arith.constant 0 : index
    %103 = vector.load %arg6[%c3, %c0_22] : memref<8x256xf32, #tpu.memory_space<vmem>>, vector<1x256xf32>
    tpu.vector_store %arg6[%c3, %c0_22], %102 {strides = array<i32>} : memref<8x256xf32, #tpu.memory_space<vmem>>, vector<1x256xf32>,
    %104 = vector.extract_strided_slice %87 {offsets = [8, 0], sizes = [1, 256], strides = [1, 1]} : vector<16x256xf32> to vector<1x256xf32>
    %105 = vector.extract_strided_slice %87 {offsets = [9, 0], sizes = [1, 256], strides = [1, 1]} : vector<16x256xf32> to vector<1x256xf32>
    %106 = arith.addf %104, %105 : vector<1x256xf32>
    %c4 = arith.constant 4 : index
    %c0_23 = arith.constant 0 : index
    %107 = vector.load %arg6[%c4, %c0_23] : memref<8x256xf32, #tpu.memory_space<vmem>>, vector<1x256xf32>
    tpu.vector_store %arg6[%c4, %c0_23], %106 {strides = array<i32>} : memref<8x256xf32, #tpu.memory_space<vmem>>, vector<1x256xf32>,
    %108 = vector.extract_strided_slice %87 {offsets = [10, 0], sizes = [1, 256], strides = [1, 1]} : vector<16x256xf32> to vector<1x256xf32>
    %109 = vector.extract_strided_slice %87 {offsets = [11, 0], sizes = [1, 256], strides = [1, 1]} : vector<16x256xf32> to vector<1x256xf32>
    %110 = arith.addf %108, %109 : vector<1x256xf32>
    %c5 = arith.constant 5 : index
    %c0_24 = arith.constant 0 : index
    %111 = vector.load %arg6[%c5, %c0_24] : memref<8x256xf32, #tpu.memory_space<vmem>>, vector<1x256xf32>
    tpu.vector_store %arg6[%c5, %c0_24], %110 {strides = array<i32>} : memref<8x256xf32, #tpu.memory_space<vmem>>, vector<1x256xf32>,
    %112 = vector.extract_strided_slice %87 {offsets = [12, 0], sizes = [1, 256], strides = [1, 1]} : vector<16x256xf32> to vector<1x256xf32>
    %113 = vector.extract_strided_slice %87 {offsets = [13, 0], sizes = [1, 256], strides = [1, 1]} : vector<16x256xf32> to vector<1x256xf32>
    %114 = arith.addf %112, %113 : vector<1x256xf32>
    %c6 = arith.constant 6 : index
    %c0_25 = arith.constant 0 : index
    %115 = vector.load %arg6[%c6, %c0_25] : memref<8x256xf32, #tpu.memory_space<vmem>>, vector<1x256xf32>
    tpu.vector_store %arg6[%c6, %c0_25], %114 {strides = array<i32>} : memref<8x256xf32, #tpu.memory_space<vmem>>, vector<1x256xf32>,
    %116 = vector.extract_strided_slice %87 {offsets = [14, 0], sizes = [1, 256], strides = [1, 1]} : vector<16x256xf32> to vector<1x256xf32>
    %117 = vector.extract_strided_slice %87 {offsets = [15, 0], sizes = [1, 256], strides = [1, 1]} : vector<16x256xf32> to vector<1x256xf32>
    %118 = arith.addf %116, %117 : vector<1x256xf32>
    %c7 = arith.constant 7 : index
    %c0_26 = arith.constant 0 : index
    %119 = vector.load %arg6[%c7, %c0_26] : memref<8x256xf32, #tpu.memory_space<vmem>>, vector<1x256xf32>
    tpu.vector_store %arg6[%c7, %c0_26], %118 {strides = array<i32>} : memref<8x256xf32, #tpu.memory_space<vmem>>, vector<1x256xf32>,
    %c0_27 = arith.constant 0 : index
    %c0_28 = arith.constant 0 : index
    %120 = vector.load %arg6[%c0_27, %c0_28] : memref<8x256xf32, #tpu.memory_space<vmem>>, vector<8x256xf32>
    %cst_29 = arith.constant dense<0.000000e+00> : vector<8xf32>
    %121 = vector.multi_reduction <add>, %120, %cst_29 [1] : vector<8x256xf32> to vector<8xf32>
    %122 = vector.shape_cast %121 : vector<8xf32> to vector<8x1xf32>
    %cst_30 = arith.constant 3.906250e-03 : f32
    %123 = vector.broadcast %cst_30 : f32 to vector<8x1xf32>
    %124 = arith.mulf %122, %123 : vector<8x1xf32>
    %125 = vector.broadcast %124 : vector<8x1xf32> to vector<8x256xf32>
    %126 = arith.subf %120, %125 : vector<8x256xf32>
    %127 = arith.mulf %126, %126 : vector<8x256xf32>
    %cst_31 = arith.constant dense<0.000000e+00> : vector<8xf32>
    %128 = vector.multi_reduction <add>, %127, %cst_31 [1] : vector<8x256xf32> to vector<8xf32>
    %129 = vector.shape_cast %128 : vector<8xf32> to vector<8x1xf32>
    %cst_32 = arith.constant 3.906250e-03 : f32
    %130 = vector.broadcast %cst_32 : f32 to vector<8x1xf32>
    %131 = arith.mulf %129, %130 : vector<8x1xf32>
    %cst_33 = arith.constant 9.99999974E-6 : f32
    %132 = vector.broadcast %cst_33 : f32 to vector<8x1xf32>
    %133 = arith.addf %131, %132 : vector<8x1xf32>
    %134 = math.rsqrt %133 : vector<8x1xf32>
    %135 = vector.broadcast %134 : vector<8x1xf32> to vector<8x256xf32>
    %136 = arith.mulf %126, %135 : vector<8x256xf32>
    %c8_34 = arith.constant 8 : index
    %c0_35 = arith.constant 0 : index
    %137 = vector.load %arg3[%c8_34, %c0_35] : memref<32x3xf32, #tpu.memory_space<vmem>>, vector<8x3xf32>
    %138 = vector.extract_strided_slice %137 {offsets = [0, 0], sizes = [8, 1], strides = [1, 1]} : vector<8x3xf32> to vector<8x1xf32>
    %139 = vector.broadcast %138 : vector<8x1xf32> to vector<8x256xf32>
    %140 = arith.mulf %139, %136 : vector<8x256xf32>
    %141 = vector.extract_strided_slice %137 {offsets = [0, 1], sizes = [8, 1], strides = [1, 1]} : vector<8x3xf32> to vector<8x1xf32>
    %142 = vector.broadcast %141 : vector<8x1xf32> to vector<8x256xf32>
    %143 = arith.addf %140, %142 : vector<8x256xf32>
    %cst_36 = arith.constant 0.000000e+00 : f32
    %144 = vector.broadcast %cst_36 : f32 to vector<8x256xf32>
    %145 = arith.cmpf oge, %143, %144 : vector<8x256xf32>
    %146 = vector.extract_strided_slice %137 {offsets = [0, 2], sizes = [8, 1], strides = [1, 1]} : vector<8x3xf32> to vector<8x1xf32>
    %147 = vector.broadcast %146 : vector<8x1xf32> to vector<8x256xf32>
    %148 = arith.mulf %147, %143 : vector<8x256xf32>
    %149 = arith.select %145, %143, %148 : vector<8x256xi1>, vector<8x256xf32>
    %c8_37 = arith.constant 8 : index
    %c256_38 = arith.constant 256 : index
    %150 = vector.load %arg5[%c8_37, %c256_38] : memref<32x768xf32, #tpu.memory_space<vmem>>, vector<8x256xf32>
    tpu.vector_store %arg5[%c8_37, %c256_38], %149 {strides = array<i32>} : memref<32x768xf32, #tpu.memory_space<vmem>>, vector<8x256xf32>,
    %c8_39 = arith.constant 8 : index
    %c0_40 = arith.constant 0 : index
    %151 = vector.load %arg5[%c8_39, %c0_40] : memref<32x768xf32, #tpu.memory_space<vmem>>, vector<24x768xf32>
    %c24_41 = arith.constant 24 : index
    %c0_42 = arith.constant 0 : index
    %152 = vector.load %arg2[%c24_41, %c0_42] : memref<80x5xf32, #tpu.memory_space<vmem>>, vector<24x5xf32>
    %153 = vector.extract_strided_slice %151 {offsets = [0, 128], sizes = [24, 256], strides = [1, 1]} : vector<24x768xf32> to vector<24x256xf32>
    %154 = vector.extract_strided_slice %152 {offsets = [0, 0], sizes = [24, 1], strides = [1, 1]} : vector<24x5xf32> to vector<24x1xf32>
    %155 = vector.broadcast %154 : vector<24x1xf32> to vector<24x256xf32>
    %156 = arith.mulf %155, %153 : vector<24x256xf32>
    %157 = vector.extract_strided_slice %151 {offsets = [0, 192], sizes = [24, 256], strides = [1, 1]} : vector<24x768xf32> to vector<24x256xf32>
    %158 = vector.extract_strided_slice %152 {offsets = [0, 1], sizes = [24, 1], strides = [1, 1]} : vector<24x5xf32> to vector<24x1xf32>
    %159 = vector.broadcast %158 : vector<24x1xf32> to vector<24x256xf32>
    %160 = arith.mulf %159, %157 : vector<24x256xf32>
    %161 = arith.addf %156, %160 : vector<24x256xf32>
    %162 = vector.extract_strided_slice %151 {offsets = [0, 256], sizes = [24, 256], strides = [1, 1]} : vector<24x768xf32> to vector<24x256xf32>
    %163 = vector.extract_strided_slice %152 {offsets = [0, 2], sizes = [24, 1], strides = [1, 1]} : vector<24x5xf32> to vector<24x1xf32>
    %164 = vector.broadcast %163 : vector<24x1xf32> to vector<24x256xf32>
    %165 = arith.mulf %164, %162 : vector<24x256xf32>
    %166 = arith.addf %161, %165 : vector<24x256xf32>
    %167 = vector.extract_strided_slice %151 {offsets = [0, 320], sizes = [24, 256], strides = [1, 1]} : vector<24x768xf32> to vector<24x256xf32>
    %168 = vector.extract_strided_slice %152 {offsets = [0, 3], sizes = [24, 1], strides = [1, 1]} : vector<24x5xf32> to vector<24x1xf32>
    %169 = vector.broadcast %168 : vector<24x1xf32> to vector<24x256xf32>
    %170 = arith.mulf %169, %167 : vector<24x256xf32>
    %171 = arith.addf %166, %170 : vector<24x256xf32>
    %172 = vector.extract_strided_slice %151 {offsets = [0, 384], sizes = [24, 256], strides = [1, 1]} : vector<24x768xf32> to vector<24x256xf32>
    %173 = vector.extract_strided_slice %152 {offsets = [0, 4], sizes = [24, 1], strides = [1, 1]} : vector<24x5xf32> to vector<24x1xf32>
    %174 = vector.broadcast %173 : vector<24x1xf32> to vector<24x256xf32>
    %175 = arith.mulf %174, %172 : vector<24x256xf32>
    %176 = arith.addf %171, %175 : vector<24x256xf32>
    %177 = vector.extract_strided_slice %176 {offsets = [0, 0], sizes = [1, 256], strides = [1, 1]} : vector<24x256xf32> to vector<1x256xf32>
    %178 = vector.extract_strided_slice %176 {offsets = [1, 0], sizes = [1, 256], strides = [1, 1]} : vector<24x256xf32> to vector<1x256xf32>
    %179 = arith.addf %177, %178 : vector<1x256xf32>
    %180 = vector.extract_strided_slice %176 {offsets = [2, 0], sizes = [1, 256], strides = [1, 1]} : vector<24x256xf32> to vector<1x256xf32>
    %181 = arith.addf %179, %180 : vector<1x256xf32>
    %c0_43 = arith.constant 0 : index
    %c0_44 = arith.constant 0 : index
    %182 = vector.load %arg6[%c0_43, %c0_44] : memref<8x256xf32, #tpu.memory_space<vmem>>, vector<1x256xf32>
    tpu.vector_store %arg6[%c0_43, %c0_44], %181 {strides = array<i32>} : memref<8x256xf32, #tpu.memory_space<vmem>>, vector<1x256xf32>,
    %183 = vector.extract_strided_slice %176 {offsets = [3, 0], sizes = [1, 256], strides = [1, 1]} : vector<24x256xf32> to vector<1x256xf32>
    %184 = vector.extract_strided_slice %176 {offsets = [4, 0], sizes = [1, 256], strides = [1, 1]} : vector<24x256xf32> to vector<1x256xf32>
    %185 = arith.addf %183, %184 : vector<1x256xf32>
    %186 = vector.extract_strided_slice %176 {offsets = [5, 0], sizes = [1, 256], strides = [1, 1]} : vector<24x256xf32> to vector<1x256xf32>
    %187 = arith.addf %185, %186 : vector<1x256xf32>
    %c1_45 = arith.constant 1 : index
    %c0_46 = arith.constant 0 : index
    %188 = vector.load %arg6[%c1_45, %c0_46] : memref<8x256xf32, #tpu.memory_space<vmem>>, vector<1x256xf32>
    tpu.vector_store %arg6[%c1_45, %c0_46], %187 {strides = array<i32>} : memref<8x256xf32, #tpu.memory_space<vmem>>, vector<1x256xf32>,
    %189 = vector.extract_strided_slice %176 {offsets = [6, 0], sizes = [1, 256], strides = [1, 1]} : vector<24x256xf32> to vector<1x256xf32>
    %190 = vector.extract_strided_slice %176 {offsets = [7, 0], sizes = [1, 256], strides = [1, 1]} : vector<24x256xf32> to vector<1x256xf32>
    %191 = arith.addf %189, %190 : vector<1x256xf32>
    %192 = vector.extract_strided_slice %176 {offsets = [8, 0], sizes = [1, 256], strides = [1, 1]} : vector<24x256xf32> to vector<1x256xf32>
    %193 = arith.addf %191, %192 : vector<1x256xf32>
    %c2_47 = arith.constant 2 : index
    %c0_48 = arith.constant 0 : index
    %194 = vector.load %arg6[%c2_47, %c0_48] : memref<8x256xf32, #tpu.memory_space<vmem>>, vector<1x256xf32>
    tpu.vector_store %arg6[%c2_47, %c0_48], %193 {strides = array<i32>} : memref<8x256xf32, #tpu.memory_space<vmem>>, vector<1x256xf32>,
    %195 = vector.extract_strided_slice %176 {offsets = [9, 0], sizes = [1, 256], strides = [1, 1]} : vector<24x256xf32> to vector<1x256xf32>
    %196 = vector.extract_strided_slice %176 {offsets = [10, 0], sizes = [1, 256], strides = [1, 1]} : vector<24x256xf32> to vector<1x256xf32>
    %197 = arith.addf %195, %196 : vector<1x256xf32>
    %198 = vector.extract_strided_slice %176 {offsets = [11, 0], sizes = [1, 256], strides = [1, 1]} : vector<24x256xf32> to vector<1x256xf32>
    %199 = arith.addf %197, %198 : vector<1x256xf32>
    %c3_49 = arith.constant 3 : index
    %c0_50 = arith.constant 0 : index
    %200 = vector.load %arg6[%c3_49, %c0_50] : memref<8x256xf32, #tpu.memory_space<vmem>>, vector<1x256xf32>
    tpu.vector_store %arg6[%c3_49, %c0_50], %199 {strides = array<i32>} : memref<8x256xf32, #tpu.memory_space<vmem>>, vector<1x256xf32>,
    %201 = vector.extract_strided_slice %176 {offsets = [12, 0], sizes = [1, 256], strides = [1, 1]} : vector<24x256xf32> to vector<1x256xf32>
    %202 = vector.extract_strided_slice %176 {offsets = [13, 0], sizes = [1, 256], strides = [1, 1]} : vector<24x256xf32> to vector<1x256xf32>
    %203 = arith.addf %201, %202 : vector<1x256xf32>
    %204 = vector.extract_strided_slice %176 {offsets = [14, 0], sizes = [1, 256], strides = [1, 1]} : vector<24x256xf32> to vector<1x256xf32>
    %205 = arith.addf %203, %204 : vector<1x256xf32>
    %c4_51 = arith.constant 4 : index
    %c0_52 = arith.constant 0 : index
    %206 = vector.load %arg6[%c4_51, %c0_52] : memref<8x256xf32, #tpu.memory_space<vmem>>, vector<1x256xf32>
    tpu.vector_store %arg6[%c4_51, %c0_52], %205 {strides = array<i32>} : memref<8x256xf32, #tpu.memory_space<vmem>>, vector<1x256xf32>,
    %207 = vector.extract_strided_slice %176 {offsets = [15, 0], sizes = [1, 256], strides = [1, 1]} : vector<24x256xf32> to vector<1x256xf32>
    %208 = vector.extract_strided_slice %176 {offsets = [16, 0], sizes = [1, 256], strides = [1, 1]} : vector<24x256xf32> to vector<1x256xf32>
    %209 = arith.addf %207, %208 : vector<1x256xf32>
    %210 = vector.extract_strided_slice %176 {offsets = [17, 0], sizes = [1, 256], strides = [1, 1]} : vector<24x256xf32> to vector<1x256xf32>
    %211 = arith.addf %209, %210 : vector<1x256xf32>
    %c5_53 = arith.constant 5 : index
    %c0_54 = arith.constant 0 : index
    %212 = vector.load %arg6[%c5_53, %c0_54] : memref<8x256xf32, #tpu.memory_space<vmem>>, vector<1x256xf32>
    tpu.vector_store %arg6[%c5_53, %c0_54], %211 {strides = array<i32>} : memref<8x256xf32, #tpu.memory_space<vmem>>, vector<1x256xf32>,
    %213 = vector.extract_strided_slice %176 {offsets = [18, 0], sizes = [1, 256], strides = [1, 1]} : vector<24x256xf32> to vector<1x256xf32>
    %214 = vector.extract_strided_slice %176 {offsets = [19, 0], sizes = [1, 256], strides = [1, 1]} : vector<24x256xf32> to vector<1x256xf32>
    %215 = arith.addf %213, %214 : vector<1x256xf32>
    %216 = vector.extract_strided_slice %176 {offsets = [20, 0], sizes = [1, 256], strides = [1, 1]} : vector<24x256xf32> to vector<1x256xf32>
    %217 = arith.addf %215, %216 : vector<1x256xf32>
    %c6_55 = arith.constant 6 : index
    %c0_56 = arith.constant 0 : index
    %218 = vector.load %arg6[%c6_55, %c0_56] : memref<8x256xf32, #tpu.memory_space<vmem>>, vector<1x256xf32>
    tpu.vector_store %arg6[%c6_55, %c0_56], %217 {strides = array<i32>} : memref<8x256xf32, #tpu.memory_space<vmem>>, vector<1x256xf32>,
    %219 = vector.extract_strided_slice %176 {offsets = [21, 0], sizes = [1, 256], strides = [1, 1]} : vector<24x256xf32> to vector<1x256xf32>
    %220 = vector.extract_strided_slice %176 {offsets = [22, 0], sizes = [1, 256], strides = [1, 1]} : vector<24x256xf32> to vector<1x256xf32>
    %221 = arith.addf %219, %220 : vector<1x256xf32>
    %222 = vector.extract_strided_slice %176 {offsets = [23, 0], sizes = [1, 256], strides = [1, 1]} : vector<24x256xf32> to vector<1x256xf32>
    %223 = arith.addf %221, %222 : vector<1x256xf32>
    %c7_57 = arith.constant 7 : index
    %c0_58 = arith.constant 0 : index
    %224 = vector.load %arg6[%c7_57, %c0_58] : memref<8x256xf32, #tpu.memory_space<vmem>>, vector<1x256xf32>
    tpu.vector_store %arg6[%c7_57, %c0_58], %223 {strides = array<i32>} : memref<8x256xf32, #tpu.memory_space<vmem>>, vector<1x256xf32>,
    %c0_59 = arith.constant 0 : index
    %c0_60 = arith.constant 0 : index
    %225 = vector.load %arg6[%c0_59, %c0_60] : memref<8x256xf32, #tpu.memory_space<vmem>>, vector<8x256xf32>
    %cst_61 = arith.constant dense<0.000000e+00> : vector<8xf32>
    %226 = vector.multi_reduction <add>, %225, %cst_61 [1] : vector<8x256xf32> to vector<8xf32>
    %227 = vector.shape_cast %226 : vector<8xf32> to vector<8x1xf32>
    %cst_62 = arith.constant 3.906250e-03 : f32
    %228 = vector.broadcast %cst_62 : f32 to vector<8x1xf32>
    %229 = arith.mulf %227, %228 : vector<8x1xf32>
    %230 = vector.broadcast %229 : vector<8x1xf32> to vector<8x256xf32>
    %231 = arith.subf %225, %230 : vector<8x256xf32>
    %232 = arith.mulf %231, %231 : vector<8x256xf32>
    %cst_63 = arith.constant dense<0.000000e+00> : vector<8xf32>
    %233 = vector.multi_reduction <add>, %232, %cst_63 [1] : vector<8x256xf32> to vector<8xf32>
    %234 = vector.shape_cast %233 : vector<8xf32> to vector<8x1xf32>
    %cst_64 = arith.constant 3.906250e-03 : f32
    %235 = vector.broadcast %cst_64 : f32 to vector<8x1xf32>
    %236 = arith.mulf %234, %235 : vector<8x1xf32>
    %cst_65 = arith.constant 9.99999974E-6 : f32
    %237 = vector.broadcast %cst_65 : f32 to vector<8x1xf32>
    %238 = arith.addf %236, %237 : vector<8x1xf32>
    %239 = math.rsqrt %238 : vector<8x1xf32>
    %240 = vector.broadcast %239 : vector<8x1xf32> to vector<8x256xf32>
    %241 = arith.mulf %231, %240 : vector<8x256xf32>
    %c16_66 = arith.constant 16 : index
    %c0_67 = arith.constant 0 : index
    %242 = vector.load %arg3[%c16_66, %c0_67] : memref<32x3xf32, #tpu.memory_space<vmem>>, vector<8x3xf32>
    %243 = vector.extract_strided_slice %242 {offsets = [0, 0], sizes = [8, 1], strides = [1, 1]} : vector<8x3xf32> to vector<8x1xf32>
    %244 = vector.broadcast %243 : vector<8x1xf32> to vector<8x256xf32>
    %245 = arith.mulf %244, %241 : vector<8x256xf32>
    %246 = vector.extract_strided_slice %242 {offsets = [0, 1], sizes = [8, 1], strides = [1, 1]} : vector<8x3xf32> to vector<8x1xf32>
    %247 = vector.broadcast %246 : vector<8x1xf32> to vector<8x256xf32>
    %248 = arith.addf %245, %247 : vector<8x256xf32>
    %cst_68 = arith.constant 0.000000e+00 : f32
    %249 = vector.broadcast %cst_68 : f32 to vector<8x256xf32>
    %250 = arith.cmpf oge, %248, %249 : vector<8x256xf32>
    %251 = vector.extract_strided_slice %242 {offsets = [0, 2], sizes = [8, 1], strides = [1, 1]} : vector<8x3xf32> to vector<8x1xf32>
    %252 = vector.broadcast %251 : vector<8x1xf32> to vector<8x256xf32>
    %253 = arith.mulf %252, %248 : vector<8x256xf32>
    %254 = arith.select %250, %248, %253 : vector<8x256xi1>, vector<8x256xf32>
    %c0_69 = arith.constant 0 : index
    %c256_70 = arith.constant 256 : index
    %255 = vector.load %arg5[%c0_69, %c256_70] : memref<32x768xf32, #tpu.memory_space<vmem>>, vector<8x256xf32>
    tpu.vector_store %arg5[%c0_69, %c256_70], %254 {strides = array<i32>} : memref<32x768xf32, #tpu.memory_space<vmem>>, vector<8x256xf32>,
    %c0_71 = arith.constant 0 : index
    %c0_72 = arith.constant 0 : index
    %256 = vector.load %arg5[%c0_71, %c0_72] : memref<32x768xf32, #tpu.memory_space<vmem>>, vector<32x768xf32>
    %c48 = arith.constant 48 : index
    %c0_73 = arith.constant 0 : index
    %257 = vector.load %arg2[%c48, %c0_73] : memref<80x5xf32, #tpu.memory_space<vmem>>, vector<32x5xf32>
    %258 = vector.extract_strided_slice %256 {offsets = [0, 0], sizes = [32, 256], strides = [1, 1]} : vector<32x768xf32> to vector<32x256xf32>
    %259 = vector.extract_strided_slice %257 {offsets = [0, 0], sizes = [32, 1], strides = [1, 1]} : vector<32x5xf32> to vector<32x1xf32>
    %260 = vector.broadcast %259 : vector<32x1xf32> to vector<32x256xf32>
    %261 = arith.mulf %260, %258 : vector<32x256xf32>
    %262 = vector.extract_strided_slice %256 {offsets = [0, 128], sizes = [32, 256], strides = [1, 1]} : vector<32x768xf32> to vector<32x256xf32>
    %263 = vector.extract_strided_slice %257 {offsets = [0, 1], sizes = [32, 1], strides = [1, 1]} : vector<32x5xf32> to vector<32x1xf32>
    %264 = vector.broadcast %263 : vector<32x1xf32> to vector<32x256xf32>
    %265 = arith.mulf %264, %262 : vector<32x256xf32>
    %266 = arith.addf %261, %265 : vector<32x256xf32>
    %267 = vector.extract_strided_slice %256 {offsets = [0, 256], sizes = [32, 256], strides = [1, 1]} : vector<32x768xf32> to vector<32x256xf32>
    %268 = vector.extract_strided_slice %257 {offsets = [0, 2], sizes = [32, 1], strides = [1, 1]} : vector<32x5xf32> to vector<32x1xf32>
    %269 = vector.broadcast %268 : vector<32x1xf32> to vector<32x256xf32>
    %270 = arith.mulf %269, %267 : vector<32x256xf32>
    %271 = arith.addf %266, %270 : vector<32x256xf32>
    %272 = vector.extract_strided_slice %256 {offsets = [0, 384], sizes = [32, 256], strides = [1, 1]} : vector<32x768xf32> to vector<32x256xf32>
    %273 = vector.extract_strided_slice %257 {offsets = [0, 3], sizes = [32, 1], strides = [1, 1]} : vector<32x5xf32> to vector<32x1xf32>
    %274 = vector.broadcast %273 : vector<32x1xf32> to vector<32x256xf32>
    %275 = arith.mulf %274, %272 : vector<32x256xf32>
    %276 = arith.addf %271, %275 : vector<32x256xf32>
    %277 = vector.extract_strided_slice %256 {offsets = [0, 512], sizes = [32, 256], strides = [1, 1]} : vector<32x768xf32> to vector<32x256xf32>
    %278 = vector.extract_strided_slice %257 {offsets = [0, 4], sizes = [32, 1], strides = [1, 1]} : vector<32x5xf32> to vector<32x1xf32>
    %279 = vector.broadcast %278 : vector<32x1xf32> to vector<32x256xf32>
    %280 = arith.mulf %279, %277 : vector<32x256xf32>
    %281 = arith.addf %276, %280 : vector<32x256xf32>
    %282 = vector.extract_strided_slice %281 {offsets = [0, 0], sizes = [1, 256], strides = [1, 1]} : vector<32x256xf32> to vector<1x256xf32>
    %283 = vector.extract_strided_slice %281 {offsets = [1, 0], sizes = [1, 256], strides = [1, 1]} : vector<32x256xf32> to vector<1x256xf32>
    %284 = arith.addf %282, %283 : vector<1x256xf32>
    %285 = vector.extract_strided_slice %281 {offsets = [2, 0], sizes = [1, 256], strides = [1, 1]} : vector<32x256xf32> to vector<1x256xf32>
    %286 = arith.addf %284, %285 : vector<1x256xf32>
    %287 = vector.extract_strided_slice %281 {offsets = [3, 0], sizes = [1, 256], strides = [1, 1]} : vector<32x256xf32> to vector<1x256xf32>
    %288 = arith.addf %286, %287 : vector<1x256xf32>
    %c0_74 = arith.constant 0 : index
    %c0_75 = arith.constant 0 : index
    %289 = vector.load %arg6[%c0_74, %c0_75] : memref<8x256xf32, #tpu.memory_space<vmem>>, vector<1x256xf32>
    tpu.vector_store %arg6[%c0_74, %c0_75], %288 {strides = array<i32>} : memref<8x256xf32, #tpu.memory_space<vmem>>, vector<1x256xf32>,
    %290 = vector.extract_strided_slice %281 {offsets = [4, 0], sizes = [1, 256], strides = [1, 1]} : vector<32x256xf32> to vector<1x256xf32>
    %291 = vector.extract_strided_slice %281 {offsets = [5, 0], sizes = [1, 256], strides = [1, 1]} : vector<32x256xf32> to vector<1x256xf32>
    %292 = arith.addf %290, %291 : vector<1x256xf32>
    %293 = vector.extract_strided_slice %281 {offsets = [6, 0], sizes = [1, 256], strides = [1, 1]} : vector<32x256xf32> to vector<1x256xf32>
    %294 = arith.addf %292, %293 : vector<1x256xf32>
    %295 = vector.extract_strided_slice %281 {offsets = [7, 0], sizes = [1, 256], strides = [1, 1]} : vector<32x256xf32> to vector<1x256xf32>
    %296 = arith.addf %294, %295 : vector<1x256xf32>
    %c1_76 = arith.constant 1 : index
    %c0_77 = arith.constant 0 : index
    %297 = vector.load %arg6[%c1_76, %c0_77] : memref<8x256xf32, #tpu.memory_space<vmem>>, vector<1x256xf32>
    tpu.vector_store %arg6[%c1_76, %c0_77], %296 {strides = array<i32>} : memref<8x256xf32, #tpu.memory_space<vmem>>, vector<1x256xf32>,
    %298 = vector.extract_strided_slice %281 {offsets = [8, 0], sizes = [1, 256], strides = [1, 1]} : vector<32x256xf32> to vector<1x256xf32>
    %299 = vector.extract_strided_slice %281 {offsets = [9, 0], sizes = [1, 256], strides = [1, 1]} : vector<32x256xf32> to vector<1x256xf32>
    %300 = arith.addf %298, %299 : vector<1x256xf32>
    %301 = vector.extract_strided_slice %281 {offsets = [10, 0], sizes = [1, 256], strides = [1, 1]} : vector<32x256xf32> to vector<1x256xf32>
    %302 = arith.addf %300, %301 : vector<1x256xf32>
    %303 = vector.extract_strided_slice %281 {offsets = [11, 0], sizes = [1, 256], strides = [1, 1]} : vector<32x256xf32> to vector<1x256xf32>
    %304 = arith.addf %302, %303 : vector<1x256xf32>
    %c2_78 = arith.constant 2 : index
    %c0_79 = arith.constant 0 : index
    %305 = vector.load %arg6[%c2_78, %c0_79] : memref<8x256xf32, #tpu.memory_space<vmem>>, vector<1x256xf32>
    tpu.vector_store %arg6[%c2_78, %c0_79], %304 {strides = array<i32>} : memref<8x256xf32, #tpu.memory_space<vmem>>, vector<1x256xf32>,
    %306 = vector.extract_strided_slice %281 {offsets = [12, 0], sizes = [1, 256], strides = [1, 1]} : vector<32x256xf32> to vector<1x256xf32>
    %307 = vector.extract_strided_slice %281 {offsets = [13, 0], sizes = [1, 256], strides = [1, 1]} : vector<32x256xf32> to vector<1x256xf32>
    %308 = arith.addf %306, %307 : vector<1x256xf32>
    %309 = vector.extract_strided_slice %281 {offsets = [14, 0], sizes = [1, 256], strides = [1, 1]} : vector<32x256xf32> to vector<1x256xf32>
    %310 = arith.addf %308, %309 : vector<1x256xf32>
    %311 = vector.extract_strided_slice %281 {offsets = [15, 0], sizes = [1, 256], strides = [1, 1]} : vector<32x256xf32> to vector<1x256xf32>
    %312 = arith.addf %310, %311 : vector<1x256xf32>
    %c3_80 = arith.constant 3 : index
    %c0_81 = arith.constant 0 : index
    %313 = vector.load %arg6[%c3_80, %c0_81] : memref<8x256xf32, #tpu.memory_space<vmem>>, vector<1x256xf32>
    tpu.vector_store %arg6[%c3_80, %c0_81], %312 {strides = array<i32>} : memref<8x256xf32, #tpu.memory_space<vmem>>, vector<1x256xf32>,
    %314 = vector.extract_strided_slice %281 {offsets = [16, 0], sizes = [1, 256], strides = [1, 1]} : vector<32x256xf32> to vector<1x256xf32>
    %315 = vector.extract_strided_slice %281 {offsets = [17, 0], sizes = [1, 256], strides = [1, 1]} : vector<32x256xf32> to vector<1x256xf32>
    %316 = arith.addf %314, %315 : vector<1x256xf32>
    %317 = vector.extract_strided_slice %281 {offsets = [18, 0], sizes = [1, 256], strides = [1, 1]} : vector<32x256xf32> to vector<1x256xf32>
    %318 = arith.addf %316, %317 : vector<1x256xf32>
    %319 = vector.extract_strided_slice %281 {offsets = [19, 0], sizes = [1, 256], strides = [1, 1]} : vector<32x256xf32> to vector<1x256xf32>
    %320 = arith.addf %318, %319 : vector<1x256xf32>
    %c4_82 = arith.constant 4 : index
    %c0_83 = arith.constant 0 : index
    %321 = vector.load %arg6[%c4_82, %c0_83] : memref<8x256xf32, #tpu.memory_space<vmem>>, vector<1x256xf32>
    tpu.vector_store %arg6[%c4_82, %c0_83], %320 {strides = array<i32>} : memref<8x256xf32, #tpu.memory_space<vmem>>, vector<1x256xf32>,
    %322 = vector.extract_strided_slice %281 {offsets = [20, 0], sizes = [1, 256], strides = [1, 1]} : vector<32x256xf32> to vector<1x256xf32>
    %323 = vector.extract_strided_slice %281 {offsets = [21, 0], sizes = [1, 256], strides = [1, 1]} : vector<32x256xf32> to vector<1x256xf32>
    %324 = arith.addf %322, %323 : vector<1x256xf32>
    %325 = vector.extract_strided_slice %281 {offsets = [22, 0], sizes = [1, 256], strides = [1, 1]} : vector<32x256xf32> to vector<1x256xf32>
    %326 = arith.addf %324, %325 : vector<1x256xf32>
    %327 = vector.extract_strided_slice %281 {offsets = [23, 0], sizes = [1, 256], strides = [1, 1]} : vector<32x256xf32> to vector<1x256xf32>
    %328 = arith.addf %326, %327 : vector<1x256xf32>
    %c5_84 = arith.constant 5 : index
    %c0_85 = arith.constant 0 : index
    %329 = vector.load %arg6[%c5_84, %c0_85] : memref<8x256xf32, #tpu.memory_space<vmem>>, vector<1x256xf32>
    tpu.vector_store %arg6[%c5_84, %c0_85], %328 {strides = array<i32>} : memref<8x256xf32, #tpu.memory_space<vmem>>, vector<1x256xf32>,
    %330 = vector.extract_strided_slice %281 {offsets = [24, 0], sizes = [1, 256], strides = [1, 1]} : vector<32x256xf32> to vector<1x256xf32>
    %331 = vector.extract_strided_slice %281 {offsets = [25, 0], sizes = [1, 256], strides = [1, 1]} : vector<32x256xf32> to vector<1x256xf32>
    %332 = arith.addf %330, %331 : vector<1x256xf32>
    %333 = vector.extract_strided_slice %281 {offsets = [26, 0], sizes = [1, 256], strides = [1, 1]} : vector<32x256xf32> to vector<1x256xf32>
    %334 = arith.addf %332, %333 : vector<1x256xf32>
    %335 = vector.extract_strided_slice %281 {offsets = [27, 0], sizes = [1, 256], strides = [1, 1]} : vector<32x256xf32> to vector<1x256xf32>
    %336 = arith.addf %334, %335 : vector<1x256xf32>
    %c6_86 = arith.constant 6 : index
    %c0_87 = arith.constant 0 : index
    %337 = vector.load %arg6[%c6_86, %c0_87] : memref<8x256xf32, #tpu.memory_space<vmem>>, vector<1x256xf32>
    tpu.vector_store %arg6[%c6_86, %c0_87], %336 {strides = array<i32>} : memref<8x256xf32, #tpu.memory_space<vmem>>, vector<1x256xf32>,
    %338 = vector.extract_strided_slice %281 {offsets = [28, 0], sizes = [1, 256], strides = [1, 1]} : vector<32x256xf32> to vector<1x256xf32>
    %339 = vector.extract_strided_slice %281 {offsets = [29, 0], sizes = [1, 256], strides = [1, 1]} : vector<32x256xf32> to vector<1x256xf32>
    %340 = arith.addf %338, %339 : vector<1x256xf32>
    %341 = vector.extract_strided_slice %281 {offsets = [30, 0], sizes = [1, 256], strides = [1, 1]} : vector<32x256xf32> to vector<1x256xf32>
    %342 = arith.addf %340, %341 : vector<1x256xf32>
    %343 = vector.extract_strided_slice %281 {offsets = [31, 0], sizes = [1, 256], strides = [1, 1]} : vector<32x256xf32> to vector<1x256xf32>
    %344 = arith.addf %342, %343 : vector<1x256xf32>
    %c7_88 = arith.constant 7 : index
    %c0_89 = arith.constant 0 : index
    %345 = vector.load %arg6[%c7_88, %c0_89] : memref<8x256xf32, #tpu.memory_space<vmem>>, vector<1x256xf32>
    tpu.vector_store %arg6[%c7_88, %c0_89], %344 {strides = array<i32>} : memref<8x256xf32, #tpu.memory_space<vmem>>, vector<1x256xf32>,
    %c0_90 = arith.constant 0 : index
    %c0_91 = arith.constant 0 : index
    %346 = vector.load %arg6[%c0_90, %c0_91] : memref<8x256xf32, #tpu.memory_space<vmem>>, vector<8x256xf32>
    %cst_92 = arith.constant dense<0.000000e+00> : vector<8xf32>
    %347 = vector.multi_reduction <add>, %346, %cst_92 [1] : vector<8x256xf32> to vector<8xf32>
    %348 = vector.shape_cast %347 : vector<8xf32> to vector<8x1xf32>
    %cst_93 = arith.constant 3.906250e-03 : f32
    %349 = vector.broadcast %cst_93 : f32 to vector<8x1xf32>
    %350 = arith.mulf %348, %349 : vector<8x1xf32>
    %351 = vector.broadcast %350 : vector<8x1xf32> to vector<8x256xf32>
    %352 = arith.subf %346, %351 : vector<8x256xf32>
    %353 = arith.mulf %352, %352 : vector<8x256xf32>
    %cst_94 = arith.constant dense<0.000000e+00> : vector<8xf32>
    %354 = vector.multi_reduction <add>, %353, %cst_94 [1] : vector<8x256xf32> to vector<8xf32>
    %355 = vector.shape_cast %354 : vector<8xf32> to vector<8x1xf32>
    %cst_95 = arith.constant 3.906250e-03 : f32
    %356 = vector.broadcast %cst_95 : f32 to vector<8x1xf32>
    %357 = arith.mulf %355, %356 : vector<8x1xf32>
    %cst_96 = arith.constant 9.99999974E-6 : f32
    %358 = vector.broadcast %cst_96 : f32 to vector<8x1xf32>
    %359 = arith.addf %357, %358 : vector<8x1xf32>
    %360 = math.rsqrt %359 : vector<8x1xf32>
    %361 = vector.broadcast %360 : vector<8x1xf32> to vector<8x256xf32>
    %362 = arith.mulf %352, %361 : vector<8x256xf32>
    %c24_97 = arith.constant 24 : index
    %c0_98 = arith.constant 0 : index
    %363 = vector.load %arg3[%c24_97, %c0_98] : memref<32x3xf32, #tpu.memory_space<vmem>>, vector<8x3xf32>
    %364 = vector.extract_strided_slice %363 {offsets = [0, 0], sizes = [8, 1], strides = [1, 1]} : vector<8x3xf32> to vector<8x1xf32>
    %365 = vector.broadcast %364 : vector<8x1xf32> to vector<8x256xf32>
    %366 = arith.mulf %365, %362 : vector<8x256xf32>
    %367 = vector.extract_strided_slice %363 {offsets = [0, 1], sizes = [8, 1], strides = [1, 1]} : vector<8x3xf32> to vector<8x1xf32>
    %368 = vector.broadcast %367 : vector<8x1xf32> to vector<8x256xf32>
    %369 = arith.addf %366, %368 : vector<8x256xf32>
    %cst_99 = arith.constant 0.000000e+00 : f32
    %370 = vector.broadcast %cst_99 : f32 to vector<8x256xf32>
    %371 = arith.cmpf oge, %369, %370 : vector<8x256xf32>
    %372 = vector.extract_strided_slice %363 {offsets = [0, 2], sizes = [8, 1], strides = [1, 1]} : vector<8x3xf32> to vector<8x1xf32>
    %373 = vector.broadcast %372 : vector<8x1xf32> to vector<8x256xf32>
    %374 = arith.mulf %373, %369 : vector<8x256xf32>
    %375 = arith.select %371, %369, %374 : vector<8x256xi1>, vector<8x256xf32>
    %c0_100 = arith.constant 0 : index
    %c0_101 = arith.constant 0 : index
    %c0_102 = arith.constant 0 : index
    %376 = vector.load %arg4[%c0_100, %c0_101, %c0_102] : memref<1x8x256xf32, #tpu.memory_space<vmem>>, vector<1x8x256xf32>
    %377 = vector.shape_cast %376 : vector<1x8x256xf32> to vector<8x256xf32>
    %378 = vector.shape_cast %375 : vector<8x256xf32> to vector<1x8x256xf32>
    tpu.vector_store %arg4[%c0_100, %c0_101, %c0_102], %378 {strides = array<i32>} : memref<1x8x256xf32, #tpu.memory_space<vmem>>, vector<1x8x256xf32>,
    return
  }
  func.func @transform_0(%arg0: i32) -> (i32, i32, i32) {
    %c0_i32 = arith.constant 0 : i32
    %c0_i32_0 = arith.constant 0 : i32
    %c0_i32_1 = arith.constant 0 : i32
    return %arg0, %c0_i32, %c0_i32_0 : i32, i32, i32
  }
  func.func @transform_1(%arg0: i32) -> (i32, i32) {
    %c0_i32 = arith.constant 0 : i32
    %c0_i32_0 = arith.constant 0 : i32
    %c0_i32_1 = arith.constant 0 : i32
    return %c0_i32, %c0_i32_0 : i32, i32
  }
  func.func @transform_2(%arg0: i32) -> (i32, i32) {
    %c0_i32 = arith.constant 0 : i32
    %c0_i32_0 = arith.constant 0 : i32
    %c0_i32_1 = arith.constant 0 : i32
    return %c0_i32, %c0_i32_0 : i32, i32
  }
  func.func @transform_3(%arg0: i32) -> (i32, i32, i32) {
    %c0_i32 = arith.constant 0 : i32
    %c0_i32_0 = arith.constant 0 : i32
    %c0_i32_1 = arith.constant 0 : i32
    return %arg0, %c0_i32, %c0_i32_0 : i32, i32, i32
  }
}

</mosaic_0001>

<llo_original>
// kernel: dilated_dense_net.1
$region0: #{dilated_dense_net.1}
  #allocation0 [shape = 'u32[]', space=smem, size = 0x4, offset = 0x4, fixed_abs, tag = 'smem constant byte address 0x4 - core index']
  #allocation1 [shape = 'u32[144,128]{1,0:T(1,128)}', space=vmem, size = 0x12000, scoped, tag = 'internal scratch']
  #allocation2 [shape = 'f32[32,768]{1,0:T(8,128)}', space=vmem, size = 0x18000, scoped, tag = 'scratch operand']
  #allocation3 [shape = 'f32[8,256]{1,0:T(8,128)}', space=vmem, size = 0x2000, scoped, tag = 'scratch operand']
  %s0 = inlined_call_operand.vmem [shape: f32[2,8,256], index: 0, kind: input, shape index: {}]
  %s1 = inlined_call_operand.vmem [shape: f32[80,5], index: 1, kind: input, shape index: {}]
  %s2 = inlined_call_operand.vmem [shape: f32[32,3], index: 2, kind: input, shape index: {}]
  %s3 = inlined_call_operand.vmem [shape: f32[2,8,256], index: 3, kind: output, shape index: {}]
  %s4 = sld [smem:[#allocation0]]
  $region49: #{dilated_dense_net.1} parent=0
    _
  %s6 = ssub.s32 1, %s4
  %s7 = scalar_select 0, %s6, %s4
  loop: start=0, step=1, limit=4
  $region2: #{dilated_dense_net.1} parent=0 // loop_pre_header
    _
  $region3: #{dilated_dense_net.1} parent=0 // loop_header
    %s9 = sphi 0, %s13
    %p10 = scmp.ge.s32.totalorder %s9, 4
    %s19 = sphi 0, %s21
    %s22 = sphi 0, %s19
    %s23 = sphi 0, %s22
    %s39 = sphi 0, %s23
    %s43 = sphi 0, %s43
    %s45 = sphi 0, %s43
    %s46 = sphi 0, %s45
    %s60 = sphi 0, %s46
    %s64 = sphi 0, %s64
    %s66 = sphi 0, %s64
    %s67 = sphi 0, %s66
    %s81 = sphi 0, %s67
    %s87 = sphi 0, %s89
    %s90 = sphi 0, %s87
    %s91 = sphi 0, %s90
    %s107 = sphi 0, %s91
  $region4: #{dilated_dense_net.1} parent=0 // loop_header_branch
    %12 = sbr.rel (%p10) target = $region8
  $region5: #{dilated_dense_net.1} parent=0 // loop_body
    %s14 = ssub.s32 %s9, 1
    %s15 = ssub.s32 %s9, 2
    %s16 = sadd.s32 %s9, 1
    %s17 = ssub.s32 %s9, %s16
    %p18 = scmp.eq.s32.totalorder %s17, 0
    %s20 = sadd.s32 %s19, 1
    %s21 = scalar_select %p18, %s19, %s20
    %p24 = pneg %p18
    %p25 = scmp.eq.s32.totalorder %s9, 1
    %p26 = por %p24, %p25
    %p27 = scmp.ne.s32.totalorder %s19, %s22
    %p28 = scmp.eq.s32.totalorder %s9, 0
    %p29 = por %p27, %p28
    %p30 = scmp.ne.s32.totalorder %s19, %s22
    %p31 = scmp.eq.s32.totalorder %s14, 1
    %p32 = por %p30, %p31
    %p33 = scmp.ne.s32.totalorder %s22, %s23
    %p34 = scmp.eq.s32.totalorder %s14, 0
    %p35 = por %p33, %p34
    %p36 = scmp.ne.s32.totalorder %s22, %s23
    %p37 = scmp.eq.s32.totalorder %s15, 1
    %p38 = por %p36, %p37
    %p40 = scmp.ne.s32.totalorder %s23, %s39
    %p41 = scmp.eq.s32.totalorder %s15, 0
    %p42 = por %p40, %p41
    %s44 = sadd.s32 %s43, 1
    %p47 = scmp.eq.s32.totalorder %s9, 1
    %p48 = scmp.ne.s32.totalorder %s43, %s45
    %p49 = scmp.eq.s32.totalorder %s9, 0
    %p50 = por %p48, %p49
    %p51 = scmp.ne.s32.totalorder %s43, %s45
    %p52 = scmp.eq.s32.totalorder %s14, 1
    %p53 = por %p51, %p52
    %p54 = scmp.ne.s32.totalorder %s45, %s46
    %p55 = scmp.eq.s32.totalorder %s14, 0
    %p56 = por %p54, %p55
    %p57 = scmp.ne.s32.totalorder %s45, %s46
    %p58 = scmp.eq.s32.totalorder %s15, 1
    %p59 = por %p57, %p58
    %p61 = scmp.ne.s32.totalorder %s46, %s60
    %p62 = scmp.eq.s32.totalorder %s15, 0
    %p63 = por %p61, %p62
    %s65 = sadd.s32 %s64, 1
    %p68 = scmp.eq.s32.totalorder %s9, 1
    %p69 = scmp.ne.s32.totalorder %s64, %s66
    %p70 = scmp.eq.s32.totalorder %s9, 0
    %p71 = por %p69, %p70
    %p72 = scmp.ne.s32.totalorder %s64, %s66
    %p73 = scmp.eq.s32.totalorder %s14, 1
    %p74 = por %p72, %p73
    %p75 = scmp.ne.s32.totalorder %s66, %s67
    %p76 = scmp.eq.s32.totalorder %s14, 0
    %p77 = por %p75, %p76
    %p78 = scmp.ne.s32.totalorder %s66, %s67
    %p79 = scmp.eq.s32.totalorder %s15, 1
    %p80 = por %p78, %p79
    %p82 = scmp.ne.s32.totalorder %s67, %s81
    %p83 = scmp.eq.s32.totalorder %s15, 0
    %p84 = por %p82, %p83
    %s85 = ssub.s32 %s9, %s16
    %p86 = scmp.eq.s32.totalorder %s85, 0
    %s88 = sadd.s32 %s87, 1
    %s89 = scalar_select %p86, %s87, %s88
    %p92 = pneg %p86
    %p93 = scmp.eq.s32.totalorder %s9, 1
    %p94 = por %p92, %p93
    %p95 = scmp.ne.s32.totalorder %s87, %s90
    %p96 = scmp.eq.s32.totalorder %s9, 0
    %p97 = por %p95, %p96
    %p98 = scmp.ne.s32.totalorder %s87, %s90
    %p99 = scmp.eq.s32.totalorder %s14, 1
    %p100 = por %p98, %p99
    %p101 = scmp.ne.s32.totalorder %s90, %s91
    %p102 = scmp.eq.s32.totalorder %s14, 0
    %p103 = por %p101, %p102
    %p104 = scmp.ne.s32.totalorder %s90, %s91
    %p105 = scmp.eq.s32.totalorder %s15, 1
    %p106 = por %p104, %p105
    %p108 = scmp.ne.s32.totalorder %s91, %s107
    %p109 = scmp.eq.s32.totalorder %s15, 0
    %p110 = por %p108, %p109
    %p111 = scmp.le.s32.totalorder 1, %s9
    %p112 = scmp.lt.s32.totalorder %s9, 3
    %p113 = pnand %p111, %p112
    %p114 = pneg %p113
    // Predicated region
    $region9: #{dilated_dense_net.1} parent=5 // pred_check
      _
    $region10: #{dilated_dense_net.1} parent=5 // pred_check_branch
      %116 = sbr.rel (%p113) target = $region12
    $region11: #{dilated_dense_net.1} parent=5 // pred_region
      %s117 = ssub.s32 %s9, 1
      // Predicated region
      $region13: #{dilated_dense_net.1} parent=11 // pred_check
        %p118 = pneg %p56
      $region14: #{dilated_dense_net.1} parent=11 // pred_check_branch
        %120 = sbr.rel (%p118) target = $region16
      $region15: #{dilated_dense_net.1} parent=11 // pred_region
        _
      $region16: #{dilated_dense_net.1} parent=11 // pred_fallthru
        _
      // Predicated region
      $region17: #{dilated_dense_net.1} parent=11 // pred_check
        %p121 = pneg %p77
      $region18: #{dilated_dense_net.1} parent=11 // pred_check_branch
        %123 = sbr.rel (%p121) target = $region20
      $region19: #{dilated_dense_net.1} parent=11 // pred_region
        _
      $region20: #{dilated_dense_net.1} parent=11 // pred_fallthru
        _
    $region12: #{dilated_dense_net.1} parent=5 // pred_fallthru
      _
    %p124 = scmp.lt.s32.totalorder %s9, 2
    // Predicated region
    $region21: #{dilated_dense_net.1} parent=5 // pred_check
      %p125 = pneg %p124
    $region22: #{dilated_dense_net.1} parent=5 // pred_check_branch
      %127 = sbr.rel (%p125) target = $region24
    $region23: #{dilated_dense_net.1} parent=5 // pred_region
      // Predicated region
      $region25: #{dilated_dense_net.1} parent=23 // pred_check
        %p128 = pneg %p29
      $region26: #{dilated_dense_net.1} parent=23 // pred_check_branch
        %130 = sbr.rel (%p128) target = $region28
      $region27: #{dilated_dense_net.1} parent=23 // pred_region
        %p131 = scmp.lt.s32.totalorder %s9, 1
        %s132 = scalar_select %p131, %s9, 1
        %s133 = smul.addr %s132, 2
        %s134 = smul.addr %s133, 8
        %s135 = scalar_lea.vmem %s0, %s134
      $region28: #{dilated_dense_net.1} parent=23 // pred_fallthru
        _
    $region24: #{dilated_dense_net.1} parent=5 // pred_fallthru
      _
    %p136 = scmp.le.s32.totalorder 1, %s9
    %p137 = scmp.lt.s32.totalorder %s9, 3
    %p138 = pnand %p136, %p137
    %p139 = pneg %p138
    // Predicated region
    $region29: #{dilated_dense_net.1} parent=5 // pred_check
      _
    $region30: #{dilated_dense_net.1} parent=5 // pred_check_branch
      %141 = sbr.rel (%p138) target = $region32
    $region31: #{dilated_dense_net.1} parent=5 // pred_region
      %s142 = ssub.s32 %s9, 1
      %p143 = scmp.lt.s32.totalorder %s14, 1
      %s144 = scalar_select %p143, %s14, 1
      %s145 = smul.addr %s144, 2
      %s146 = smul.addr %s145, 8
      %s147 = scalar_lea.vmem %s0, %s146
      %p148 = pneg %p35
      %p149 = pneg %p32
      %p150 = pneg %p56
      %p151 = pneg %p53
      %p152 = pneg %p77
      %p153 = pneg %p74
      %p154 = pneg %p103
      %p155 = pneg %p100
      %p156 = scmp.lt.s32.totalorder %s14, 1
      %s157 = scalar_select %p156, %s14, 1
      %s158 = smul.addr %s157, 2
      %s159 = smul.addr %s158, 8
      %s160 = scalar_lea.vmem %s3, %s159
      %p161 = scmp.lt.s32.totalorder %s14, 1
      %s162 = scalar_select %p161, %s14, 1
      %s163 = smul.addr %s162, 2
      %s164 = smul.addr %s163, 8
      %s165 = scalar_lea.vmem %s0, %s164
      %p166 = scmp.lt.s32.totalorder %s14, 1
      %s167 = scalar_select %p166, %s14, 1
      %s168 = smul.addr %s167, 2
      %s169 = smul.addr %s168, 8
      %s170 = scalar_lea.vmem %s3, %s169
      %p171 = scmp.eq.s32.totalorder %s14, 0
      // Predicated region
      $region33: #{dilated_dense_net.1} parent=31 // pred_check
        %p172 = pneg %p171
      $region34: #{dilated_dense_net.1} parent=31 // pred_check_branch
        %174 = sbr.rel (%p172) target = $region36
      $region35: #{dilated_dense_net.1} parent=31 // pred_region
        %175 = vst [vmem:[#allocation2] sm:$0xff] 0.0
        %176 = vst [vmem:[#allocation2 + $0x8] sm:$0xff] 0.0
        %177 = vst [vmem:[#allocation2 + $0x10] sm:$0xff] 0.0
        %178 = vst [vmem:[#allocation2 + $0x18] sm:$0xff] 0.0
        %179 = vst [vmem:[#allocation2 + $0x20] sm:$0xff] 0.0
        %180 = vst [vmem:[#allocation2 + $0x28] sm:$0xff] 0.0
        %181 = vst [vmem:[#allocation2 + $0x30] sm:$0xff] 0.0
        %182 = vst [vmem:[#allocation2 + $0x38] sm:$0xff] 0.0
        %183 = vst [vmem:[#allocation2 + $0x40] sm:$0xff] 0.0
        %184 = vst [vmem:[#allocation2 + $0x48] sm:$0xff] 0.0
        %185 = vst [vmem:[#allocation2 + $0x50] sm:$0xff] 0.0
        %186 = vst [vmem:[#allocation2 + $0x58] sm:$0xff] 0.0
        %187 = vst [vmem:[#allocation2 + $0x60] sm:$0xff] 0.0
        %188 = vst [vmem:[#allocation2 + $0x68] sm:$0xff] 0.0
        %189 = vst [vmem:[#allocation2 + $0x70] sm:$0xff] 0.0
        %190 = vst [vmem:[#allocation2 + $0x78] sm:$0xff] 0.0
        %191 = vst [vmem:[#allocation2 + $0x80] sm:$0xff] 0.0
        %192 = vst [vmem:[#allocation2 + $0x88] sm:$0xff] 0.0
        %193 = vst [vmem:[#allocation2 + $0x90] sm:$0xff] 0.0
        %194 = vst [vmem:[#allocation2 + $0x98] sm:$0xff] 0.0
        %195 = vst [vmem:[#allocation2 + $0xa0] sm:$0xff] 0.0
        %196 = vst [vmem:[#allocation2 + $0xa8] sm:$0xff] 0.0
        %197 = vst [vmem:[#allocation2 + $0xb0] sm:$0xff] 0.0
        %198 = vst [vmem:[#allocation2 + $0xb8] sm:$0xff] 0.0
      $region36: #{dilated_dense_net.1} parent=31 // pred_fallthru
        _
      %v199 = vld [vmem:[%s165] sm:$0xff]
      %v200 = vld [vmem:[%s165 + $0x8] sm:$0xff]
      %201 = vst [vmem:[#allocation2 + $0xa0] sm:$0xff] %v199
      %202 = vst [vmem:[#allocation2 + $0xa8] sm:$0xff] %v200
      %v203 = vld [vmem:[#allocation2 + $0x98] sm:$0xff]
      %v204 = vld [vmem:[#allocation2 + $0xa0] sm:$0xff]
      %v205 = vld [vmem:[#allocation2 + $0xa8] sm:$0xff]
      %v206 = vld [vmem:[#allocation2 + $0xb0] sm:$0xff]
      %v207 = vld [vmem:[%s1] sm:$0xff]
      %209 = vset.pattern.permute.xlu0 0
      %210 = vperm.xlu0 %209, %v207
      %v211 = vpop.permute.xlu0 %210
      %v213 = vmul.f32 %v211, %v203
      %v214 = vmul.f32 %v211, %v204
      %v215 = vmul.f32 %v211, %v205
      %216 = vset.pattern.permute.xlu0 1
      %217 = vperm.xlu0 %216, %v207
      %v218 = vpop.permute.xlu0 %217
      %v220 = vmul.f32 %v218, %v203
      %v221 = vmul.f32 %v218, %v204
      %v222 = vmul.f32 %v218, %v205
      %226 = vrot.lane.b32.xlu0 %v220, 112
      %v227 = vpop.permute.xlu0 %226
      %228 = vrot.lane.b32.xlu0 %v221, 112
      %v229 = vpop.permute.xlu0 %228
      %230 = vrot.lane.b32.xlu0 %v222, 112
      %v231 = vpop.permute.xlu0 %230
      %vm232 = vcmask 916480
      %v233 = vsel %vm232, %v227, %v229
      %v234 = vsel %vm232, %v229, %v231
      %v238 = vadd.f32 %v213, %v233
      %v239 = vadd.f32 %v214, %v234
      %v240 = vadd.f32 %v215, %v231
      %241 = vset.pattern.permute.xlu0 2
      %242 = vperm.xlu0 %241, %v207
      %v243 = vpop.permute.xlu0 %242
      %v245 = vmul.f32 %v243, %v204
      %v246 = vmul.f32 %v243, %v205
      %249 = vrot.lane.b32.xlu0 %v245, 96
      %v250 = vpop.permute.xlu0 %249
      %251 = vrot.lane.b32.xlu0 %v246, 96
      %v252 = vpop.permute.xlu0 %251
      %vm253 = vcmask 785408
      %v254 = vsel %vm253, %v250, %v252
      %v258 = vadd.f32 %v238, %v250
      %v259 = vadd.f32 %v239, %v254
      %v260 = vadd.f32 %v240, %v252
      %261 = vset.pattern.permute.xlu0 3
      %262 = vperm.xlu0 %261, %v207
      %v263 = vpop.permute.xlu0 %262
      %v265 = vmul.f32 %v263, %v204
      %v266 = vmul.f32 %v263, %v205
      %v267 = vmul.f32 %v263, %v206
      %271 = vrot.lane.b32.xlu0 %v265, 80
      %v272 = vpop.permute.xlu0 %271
      %273 = vrot.lane.b32.xlu0 %v266, 80
      %v274 = vpop.permute.xlu0 %273
      %275 = vrot.lane.b32.xlu0 %v267, 80
      %v276 = vpop.permute.xlu0 %275
      %vm277 = vcmask 654336
      %v278 = vsel %vm277, %v272, %v274
      %v279 = vsel %vm277, %v274, %v276
      %v283 = vadd.f32 %v258, %v272
      %v284 = vadd.f32 %v259, %v278
      %v285 = vadd.f32 %v260, %v279
      %286 = vset.pattern.permute.xlu0 4
      %287 = vperm.xlu0 %286, %v207
      %v288 = vpop.permute.xlu0 %287
      %v290 = vmul.f32 %v288, %v204
      %v291 = vmul.f32 %v288, %v205
      %v292 = vmul.f32 %v288, %v206
      %296 = vrot.lane.b32.xlu0 %v290, 64
      %v297 = vpop.permute.xlu0 %296
      %298 = vrot.lane.b32.xlu0 %v291, 64
      %v299 = vpop.permute.xlu0 %298
      %300 = vrot.lane.b32.xlu0 %v292, 64
      %v301 = vpop.permute.xlu0 %300
      %vm302 = vcmask 523264
      %v303 = vsel %vm302, %v297, %v299
      %v304 = vsel %vm302, %v299, %v301
      %v308 = vadd.f32 %v283, %v297
      %v309 = vadd.f32 %v284, %v303
      %v310 = vadd.f32 %v285, %v304
      %314 = vrot.lane.b32.xlu0 %v308, 32
      %v315 = vpop.permute.xlu0 %314
      %316 = vrot.lane.b32.xlu0 %v309, 32
      %v317 = vpop.permute.xlu0 %316
      %318 = vrot.lane.b32.xlu0 %v310, 32
      %v319 = vpop.permute.xlu0 %318
      %vm320 = vcmask 261120
      %v321 = vsel %vm320, %v315, %v317
      %v322 = vsel %vm320, %v317, %v319
      %v325 = vadd.f32 %v321, %v322
      %326 = vadd.xlane.f32.xlu0 %v325
      %v327 = vpop.xlane.xlu0 %326
      %v328 = vmul.f32 %v327, 0.00390625
      %v329 = vsub.f32 %v308, %v328
      %v330 = vsub.f32 %v309, %v328
      %v331 = vsub.f32 %v310, %v328
      %v332 = vmul.f32 %v329, %v329
      %v333 = vmul.f32 %v330, %v330
      %v334 = vmul.f32 %v331, %v331
      %338 = vrot.lane.b32.xlu0 %v332, 32
      %v339 = vpop.permute.xlu0 %338
      %340 = vrot.lane.b32.xlu0 %v333, 32
      %v341 = vpop.permute.xlu0 %340
      %342 = vrot.lane.b32.xlu0 %v334, 32
      %v343 = vpop.permute.xlu0 %342
      %v344 = vsel %vm320, %v339, %v341
      %v345 = vsel %vm320, %v341, %v343
      %v348 = vadd.f32 %v344, %v345
      %349 = vadd.xlane.f32.xlu0 %v348
      %v350 = vpop.xlane.xlu0 %349
      %v351 = vmul.f32 %v350, 0.00390625
      %v352 = vadd.f32 %v351, 1e-05
      %v353 = vrsqrt.pop %v352
      %v354 = vmul.f32 %v329, %v353
      %v355 = vmul.f32 %v330, %v353
      %v356 = vmul.f32 %v331, %v353
      %v357 = vld [vmem:[%s2] sm:$0xff]
      %359 = vset.pattern.permute.xlu0 0
      %360 = vperm.xlu0 %359, %v357
      %v361 = vpop.permute.xlu0 %360
      %v363 = vmul.f32 %v361, %v354
      %v364 = vmul.f32 %v361, %v355
      %v365 = vmul.f32 %v361, %v356
      %366 = vset.pattern.permute.xlu0 1
      %367 = vperm.xlu0 %366, %v357
      %v368 = vpop.permute.xlu0 %367
      %v370 = vadd.f32 %v363, %v368
      %v371 = vadd.f32 %v364, %v368
      %v372 = vadd.f32 %v365, %v368
      %vm373 = vcmp.ge.f32.partialorder %v370, 0.0
      %vm374 = vcmp.ge.f32.partialorder %v371, 0.0
      %vm375 = vcmp.ge.f32.partialorder %v372, 0.0
      %376 = vset.pattern.permute.xlu0 2
      %377 = vperm.xlu0 %376, %v357
      %v378 = vpop.permute.xlu0 %377
      %v380 = vmul.f32 %v378, %v370
      %v381 = vmul.f32 %v378, %v371
      %v382 = vmul.f32 %v378, %v372
      %v383 = vsel %vm373, %v370, %v380
      %v384 = vsel %vm374, %v371, %v381
      %v385 = vsel %vm375, %v372, %v382
      %389 = vrot.lane.b32.xlu0 %v383, 32
      %v390 = vpop.permute.xlu0 %389
      %391 = vrot.lane.b32.xlu0 %v384, 32
      %v392 = vpop.permute.xlu0 %391
      %393 = vrot.lane.b32.xlu0 %v385, 32
      %v394 = vpop.permute.xlu0 %393
      %v395 = vsel %vm320, %v390, %v392
      %v396 = vsel %vm320, %v392, %v394
      %399 = vst [vmem:[#allocation2 + $0x70] sm:$0xff] %v395
      %400 = vst [vmem:[#allocation2 + $0x78] sm:$0xff] %v396
      %v401 = vld [vmem:[#allocation2 + $0x68] sm:$0xff]
      %v402 = vld [vmem:[#allocation2 + $0x70] sm:$0xff]
      %v403 = vld [vmem:[#allocation2 + $0x78] sm:$0xff]
      %v404 = vld [vmem:[#allocation2 + $0x80] sm:$0xff]
      %v405 = vld [vmem:[#allocation2 + $0x98] sm:$0xff]
      %v406 = vld [vmem:[#allocation2 + $0xa0] sm:$0xff]
      %v407 = vld [vmem:[#allocation2 + $0xa8] sm:$0xff]
      %v408 = vld [vmem:[#allocation2 + $0xb0] sm:$0xff]
      %v409 = vld [vmem:[%s1 + $0x8] sm:$0xff]
      %v410 = vld [vmem:[%s1 + $0x10] sm:$0xff]
      %412 = vset.pattern.permute.xlu0 0
      %413 = vperm.xlu0 %412, %v409
      %v414 = vpop.permute.xlu0 %413
      %417 = vset.pattern.permute.xlu0 0
      %418 = vperm.xlu0 %417, %v410
      %v419 = vpop.permute.xlu0 %418
      %v421 = vmul.f32 %v414, %v401
      %v422 = vmul.f32 %v414, %v402
      %v423 = vmul.f32 %v414, %v403
      %v424 = vmul.f32 %v419, %v405
      %v425 = vmul.f32 %v419, %v406
      %v426 = vmul.f32 %v419, %v407
      %427 = vset.pattern.permute.xlu0 1
      %428 = vperm.xlu0 %427, %v409
      %v429 = vpop.permute.xlu0 %428
      %431 = vset.pattern.permute.xlu0 1
      %432 = vperm.xlu0 %431, %v410
      %v433 = vpop.permute.xlu0 %432
      %v435 = vmul.f32 %v429, %v401
      %v436 = vmul.f32 %v429, %v402
      %v437 = vmul.f32 %v429, %v403
      %v438 = vmul.f32 %v433, %v405
      %v439 = vmul.f32 %v433, %v406
      %v440 = vmul.f32 %v433, %v407
      %447 = vrot.lane.b32.xlu0 %v435, 96
      %v448 = vpop.permute.xlu0 %447
      %449 = vrot.lane.b32.xlu0 %v436, 96
      %v450 = vpop.permute.xlu0 %449
      %451 = vrot.lane.b32.xlu0 %v437, 96
      %v452 = vpop.permute.xlu0 %451
      %453 = vrot.lane.b32.xlu0 %v438, 96
      %v454 = vpop.permute.xlu0 %453
      %455 = vrot.lane.b32.xlu0 %v439, 96
      %v456 = vpop.permute.xlu0 %455
      %457 = vrot.lane.b32.xlu0 %v440, 96
      %v458 = vpop.permute.xlu0 %457
      %v459 = vsel %vm253, %v448, %v450
      %v460 = vsel %vm253, %v450, %v452
      %v461 = vsel %vm253, %v454, %v456
      %v462 = vsel %vm253, %v456, %v458
      %v469 = vadd.f32 %v421, %v459
      %v470 = vadd.f32 %v422, %v460
      %v471 = vadd.f32 %v423, %v452
      %v472 = vadd.f32 %v424, %v461
      %v473 = vadd.f32 %v425, %v462
      %v474 = vadd.f32 %v426, %v458
      %475 = vset.pattern.permute.xlu0 2
      %476 = vperm.xlu0 %475, %v409
      %v477 = vpop.permute.xlu0 %476
      %479 = vset.pattern.permute.xlu0 2
      %480 = vperm.xlu0 %479, %v410
      %v481 = vpop.permute.xlu0 %480
      %v483 = vmul.f32 %v477, %v402
      %v484 = vmul.f32 %v477, %v403
      %v485 = vmul.f32 %v481, %v406
      %v486 = vmul.f32 %v481, %v407
      %491 = vrot.lane.b32.xlu0 %v483, 64
      %v492 = vpop.permute.xlu0 %491
      %493 = vrot.lane.b32.xlu0 %v484, 64
      %v494 = vpop.permute.xlu0 %493
      %495 = vrot.lane.b32.xlu0 %v485, 64
      %v496 = vpop.permute.xlu0 %495
      %497 = vrot.lane.b32.xlu0 %v486, 64
      %v498 = vpop.permute.xlu0 %497
      %v499 = vsel %vm302, %v492, %v494
      %v500 = vsel %vm302, %v496, %v498
      %v507 = vadd.f32 %v469, %v492
      %v508 = vadd.f32 %v470, %v499
      %v509 = vadd.f32 %v471, %v494
      %v510 = vadd.f32 %v472, %v496
      %v511 = vadd.f32 %v473, %v500
      %v512 = vadd.f32 %v474, %v498
      %513 = vset.pattern.permute.xlu0 3
      %514 = vperm.xlu0 %513, %v409
      %v515 = vpop.permute.xlu0 %514
      %517 = vset.pattern.permute.xlu0 3
      %518 = vperm.xlu0 %517, %v410
      %v519 = vpop.permute.xlu0 %518
      %v521 = vmul.f32 %v515, %v402
      %v522 = vmul.f32 %v515, %v403
      %v523 = vmul.f32 %v515, %v404
      %v524 = vmul.f32 %v519, %v406
      %v525 = vmul.f32 %v519, %v407
      %v526 = vmul.f32 %v519, %v408
      %533 = vrot.lane.b32.xlu0 %v521, 32
      %v534 = vpop.permute.xlu0 %533
      %535 = vrot.lane.b32.xlu0 %v522, 32
      %v536 = vpop.permute.xlu0 %535
      %537 = vrot.lane.b32.xlu0 %v523, 32
      %v538 = vpop.permute.xlu0 %537
      %539 = vrot.lane.b32.xlu0 %v524, 32
      %v540 = vpop.permute.xlu0 %539
      %541 = vrot.lane.b32.xlu0 %v525, 32
      %v542 = vpop.permute.xlu0 %541
      %543 = vrot.lane.b32.xlu0 %v526, 32
      %v544 = vpop.permute.xlu0 %543
      %v545 = vsel %vm320, %v534, %v536
      %v546 = vsel %vm320, %v536, %v538
      %v547 = vsel %vm320, %v540, %v542
      %v548 = vsel %vm320, %v542, %v544
      %v555 = vadd.f32 %v507, %v534
      %v556 = vadd.f32 %v508, %v545
      %v557 = vadd.f32 %v509, %v546
      %v558 = vadd.f32 %v510, %v540
      %v559 = vadd.f32 %v511, %v547
      %v560 = vadd.f32 %v512, %v548
      %561 = vset.pattern.permute.xlu0 4
      %562 = vperm.xlu0 %561, %v409
      %v563 = vpop.permute.xlu0 %562
      %565 = vset.pattern.permute.xlu0 4
      %566 = vperm.xlu0 %565, %v410
      %v567 = vpop.permute.xlu0 %566
      %v569 = vmul.f32 %v563, %v402
      %v570 = vmul.f32 %v563, %v403
      %v571 = vmul.f32 %v563, %v404
      %v572 = vmul.f32 %v567, %v406
      %v573 = vmul.f32 %v567, %v407
      %v574 = vmul.f32 %v567, %v408
      %v575 = vadd.f32 %v555, %v569
      %v576 = vadd.f32 %v556, %v570
      %v577 = vadd.f32 %v557, %v571
      %v578 = vadd.f32 %v558, %v572
      %v579 = vadd.f32 %v559, %v573
      %v580 = vadd.f32 %v560, %v574
      %v584 = vrot.slane %v575, 1
      %v585 = vrot.slane %v576, 1
      %v586 = vrot.slane %v577, 1
      %v590 = vadd.f32 %v575, %v584
      %v591 = vadd.f32 %v576, %v585
      %v592 = vadd.f32 %v577, %v586
      %v596 = vcombine.low %v590, %v591
      %v598 = vunpack.c.l.s4 1966171168
      %v599 = vunpack.c.0.s8 %v598
      %v600 = vlaneseq
      %v601 = vshrl.u32 %v600, 7
      %v602 = vsub.s32 %v599, %v601
      %v603 = vrot.slane %v596, %v602
      %v605 = vunpack.c.l.s4 1966171168
      %v606 = vunpack.c.0.s8 %v605
      %v607 = vlaneseq
      %v608 = vshrl.u32 %v607, 7
      %v609 = vsub.s32 %v606, %v608
      %v610 = vrot.slane %v592, %v609
      %v611 = vcombine.low %v603, %v610
      %v613 = vunpack.c.l.s4 1966171168
      %v614 = vunpack.c.0.s8 %v613
      %v615 = vlaneseq
      %v616 = vshrl.u32 %v615, 7
      %v617 = vsub.s32 %v614, %v616
      %v618 = vrot.slane %v611, %v617
      %619 = vrot.lane.b32.xlu0 %v618, 64
      %v620 = vpop.permute.xlu0 %619
      %v621 = vrot.slane %v620, 1
      %v622 = vsel %vm302, %v620, %v621
      %v624 = vlaneseq
      %vm625 = vcmp.ge.s32.totalorder %v624, 0
      %vm626 = vcmp.lt.s32.totalorder %v624, 256
      %vm627 = vmand %vm625, %vm626
      %628 = vst.msk [vmem:[#allocation3] ss:$8 sm:$0x3] %vm627, %v622
      %629 = vst.msk [vmem:[#allocation3] ss:$8 sm:$0x0] %vm627, %v622
      %v630 = vcombine.high %v618, %v618
      %631 = vrot.lane.b32.xlu0 %v630, 64
      %v632 = vpop.permute.xlu0 %631
      %v633 = vrot.slane %v632, 1
      %v634 = vsel %vm302, %v632, %v633
      %s636 = scalar_lea.vmem [#allocation3], 1
      %637 = vst.msk [vmem:[%s636] ss:$8 sm:$0x3] %vm627, %v634
      %638 = vst.msk [vmem:[%s636] ss:$8 sm:$0x0] %vm627, %v634
      %v639 = vcombine.high %v590, %v591
      %v640 = vcombine.high %v592, %v592
      %v642 = vunpack.c.l.s4 1966171168
      %v643 = vunpack.c.0.s8 %v642
      %v644 = vlaneseq
      %v645 = vshrl.u32 %v644, 7
      %v646 = vsub.s32 %v643, %v645
      %v647 = vrot.slane %v639, %v646
      %v649 = vunpack.c.l.s4 1966171168
      %v650 = vunpack.c.0.s8 %v649
      %v651 = vlaneseq
      %v652 = vshrl.u32 %v651, 7
      %v653 = vsub.s32 %v650, %v652
      %v654 = vrot.slane %v640, %v653
      %v655 = vcombine.low %v647, %v654
      %v657 = vunpack.c.l.s4 1966171168
      %v658 = vunpack.c.0.s8 %v657
      %v659 = vlaneseq
      %v660 = vshrl.u32 %v659, 7
      %v661 = vsub.s32 %v658, %v660
      %v662 = vrot.slane %v655, %v661
      %663 = vrot.lane.b32.xlu0 %v662, 64
      %v664 = vpop.permute.xlu0 %663
      %v665 = vrot.slane %v664, 1
      %v666 = vsel %vm302, %v664, %v665
      %s668 = scalar_lea.vmem [#allocation3], 2
      %669 = vst.msk [vmem:[%s668] ss:$8 sm:$0x3] %vm627, %v666
      %670 = vst.msk [vmem:[%s668] ss:$8 sm:$0x0] %vm627, %v666
      %v671 = vcombine.high %v662, %v662
      %672 = vrot.lane.b32.xlu0 %v671, 64
      %v673 = vpop.permute.xlu0 %672
      %v674 = vrot.slane %v673, 1
      %v675 = vsel %vm302, %v673, %v674
      %s677 = scalar_lea.vmem [#allocation3], 3
      %678 = vst.msk [vmem:[%s677] ss:$8 sm:$0x3] %vm627, %v675
      %679 = vst.msk [vmem:[%s677] ss:$8 sm:$0x0] %vm627, %v675
      %v683 = vrot.slane %v578, 1
      %v684 = vrot.slane %v579, 1
      %v685 = vrot.slane %v580, 1
      %v689 = vadd.f32 %v578, %v683
      %v690 = vadd.f32 %v579, %v684
      %v691 = vadd.f32 %v580, %v685
      %v695 = vcombine.low %v689, %v690
      %v697 = vunpack.c.l.s4 1966171168
      %v698 = vunpack.c.0.s8 %v697
      %v699 = vlaneseq
      %v700 = vshrl.u32 %v699, 7
      %v701 = vsub.s32 %v698, %v700
      %v702 = vrot.slane %v695, %v701
      %v704 = vunpack.c.l.s4 1966171168
      %v705 = vunpack.c.0.s8 %v704
      %v706 = vlaneseq
      %v707 = vshrl.u32 %v706, 7
      %v708 = vsub.s32 %v705, %v707
      %v709 = vrot.slane %v691, %v708
      %v710 = vcombine.low %v702, %v709
      %v712 = vunpack.c.l.s4 1966171168
      %v713 = vunpack.c.0.s8 %v712
      %v714 = vlaneseq
      %v715 = vshrl.u32 %v714, 7
      %v716 = vsub.s32 %v713, %v715
      %v717 = vrot.slane %v710, %v716
      %718 = vrot.lane.b32.xlu0 %v717, 64
      %v719 = vpop.permute.xlu0 %718
      %v720 = vrot.slane %v719, 1
      %v721 = vsel %vm302, %v719, %v720
      %s723 = scalar_lea.vmem [#allocation3], 4
      %724 = vst.msk [vmem:[%s723] ss:$8 sm:$0x3] %vm627, %v721
      %725 = vst.msk [vmem:[%s723] ss:$8 sm:$0x0] %vm627, %v721
      %v726 = vcombine.high %v717, %v717
      %727 = vrot.lane.b32.xlu0 %v726, 64
      %v728 = vpop.permute.xlu0 %727
      %v729 = vrot.slane %v728, 1
      %v730 = vsel %vm302, %v728, %v729
      %s732 = scalar_lea.vmem [#allocation3], 5
      %733 = vst.msk [vmem:[%s732] ss:$8 sm:$0x3] %vm627, %v730
      %734 = vst.msk [vmem:[%s732] ss:$8 sm:$0x0] %vm627, %v730
      %v735 = vcombine.high %v689, %v690
      %v736 = vcombine.high %v691, %v691
      %v738 = vunpack.c.l.s4 1966171168
      %v739 = vunpack.c.0.s8 %v738
      %v740 = vlaneseq
      %v741 = vshrl.u32 %v740, 7
      %v742 = vsub.s32 %v739, %v741
      %v743 = vrot.slane %v735, %v742
      %v745 = vunpack.c.l.s4 1966171168
      %v746 = vunpack.c.0.s8 %v745
      %v747 = vlaneseq
      %v748 = vshrl.u32 %v747, 7
      %v749 = vsub.s32 %v746, %v748
      %v750 = vrot.slane %v736, %v749
      %v751 = vcombine.low %v743, %v750
      %v753 = vunpack.c.l.s4 1966171168
      %v754 = vunpack.c.0.s8 %v753
      %v755 = vlaneseq
      %v756 = vshrl.u32 %v755, 7
      %v757 = vsub.s32 %v754, %v756
      %v758 = vrot.slane %v751, %v757
      %759 = vrot.lane.b32.xlu0 %v758, 64
      %v760 = vpop.permute.xlu0 %759
      %v761 = vrot.slane %v760, 1
      %v762 = vsel %vm302, %v760, %v761
      %s764 = scalar_lea.vmem [#allocation3], 6
      %765 = vst.msk [vmem:[%s764] ss:$8 sm:$0x3] %vm627, %v762
      %766 = vst.msk [vmem:[%s764] ss:$8 sm:$0x0] %vm627, %v762
      %v767 = vcombine.high %v758, %v758
      %768 = vrot.lane.b32.xlu0 %v767, 64
      %v769 = vpop.permute.xlu0 %768
      %v770 = vrot.slane %v769, 1
      %v771 = vsel %vm302, %v769, %v770
      %s773 = scalar_lea.vmem [#allocation3], 7
      %774 = vst.msk [vmem:[%s773] ss:$8 sm:$0x3] %vm627, %v771
      %775 = vst.msk [vmem:[%s773] ss:$8 sm:$0x0] %vm627, %v771
      %v776 = vld [vmem:[#allocation3] sm:$0xff]
      %v777 = vld [vmem:[#allocation3 + $0x8] sm:$0xff]
      %v778 = vadd.f32 %v776, %v777
      %779 = vadd.xlane.f32.xlu0 %v778
      %v780 = vpop.xlane.xlu0 %779
      %v781 = vmul.f32 %v780, 0.00390625
      %v782 = vsub.f32 %v776, %v781
      %v783 = vsub.f32 %v777, %v781
      %v784 = vmul.f32 %v782, %v782
      %v785 = vmul.f32 %v783, %v783
      %v786 = vadd.f32 %v784, %v785
      %787 = vadd.xlane.f32.xlu0 %v786
      %v788 = vpop.xlane.xlu0 %787
      %v789 = vmul.f32 %v788, 0.00390625
      %v790 = vadd.f32 %v789, 1e-05
      %v791 = vrsqrt.pop %v790
      %v792 = vmul.f32 %v782, %v791
      %v793 = vmul.f32 %v783, %v791
      %v794 = vld [vmem:[%s2 + $0x8] sm:$0xff]
      %796 = vset.pattern.permute.xlu0 0
      %797 = vperm.xlu0 %796, %v794
      %v798 = vpop.permute.xlu0 %797
      %v800 = vmul.f32 %v798, %v792
      %v801 = vmul.f32 %v798, %v793
      %802 = vset.pattern.permute.xlu0 1
      %803 = vperm.xlu0 %802, %v794
      %v804 = vpop.permute.xlu0 %803
      %v806 = vadd.f32 %v800, %v804
      %v807 = vadd.f32 %v801, %v804
      %vm808 = vcmp.ge.f32.partialorder %v806, 0.0
      %vm809 = vcmp.ge.f32.partialorder %v807, 0.0
      %810 = vset.pattern.permute.xlu0 2
      %811 = vperm.xlu0 %810, %v794
      %v812 = vpop.permute.xlu0 %811
      %v814 = vmul.f32 %v812, %v806
      %v815 = vmul.f32 %v812, %v807
      %v816 = vsel %vm808, %v806, %v814
      %v817 = vsel %vm809, %v807, %v815
      %818 = vst [vmem:[#allocation2 + $0x40] sm:$0xff] %v816
      %819 = vst [vmem:[#allocation2 + $0x48] sm:$0xff] %v817
      %v820 = vld [vmem:[#allocation2 + $0x38] sm:$0xff]
      %v821 = vld [vmem:[#allocation2 + $0x40] sm:$0xff]
      %v822 = vld [vmem:[#allocation2 + $0x48] sm:$0xff]
      %v823 = vld [vmem:[#allocation2 + $0x50] sm:$0xff]
      %v824 = vld [vmem:[#allocation2 + $0x68] sm:$0xff]
      %v825 = vld [vmem:[#allocation2 + $0x70] sm:$0xff]
      %v826 = vld [vmem:[#allocation2 + $0x78] sm:$0xff]
      %v827 = vld [vmem:[#allocation2 + $0x80] sm:$0xff]
      %v828 = vld [vmem:[#allocation2 + $0x98] sm:$0xff]
      %v829 = vld [vmem:[#allocation2 + $0xa0] sm:$0xff]
      %v830 = vld [vmem:[#allocation2 + $0xa8] sm:$0xff]
      %v831 = vld [vmem:[#allocation2 + $0xb0] sm:$0xff]
      %v832 = vld [vmem:[%s1 + $0x18] sm:$0xff]
      %v833 = vld [vmem:[%s1 + $0x20] sm:$0xff]
      %v834 = vld [vmem:[%s1 + $0x28] sm:$0xff]
      %836 = vset.pattern.permute.xlu0 0
      %837 = vperm.xlu0 %836, %v832
      %v838 = vpop.permute.xlu0 %837
      %841 = vset.pattern.permute.xlu0 0
      %842 = vperm.xlu0 %841, %v833
      %v843 = vpop.permute.xlu0 %842
      %846 = vset.pattern.permute.xlu0 0
      %847 = vperm.xlu0 %846, %v834
      %v848 = vpop.permute.xlu0 %847
      %v850 = vmul.f32 %v838, %v820
      %v851 = vmul.f32 %v838, %v821
      %v852 = vmul.f32 %v843, %v824
      %v853 = vmul.f32 %v843, %v825
      %v854 = vmul.f32 %v848, %v828
      %v855 = vmul.f32 %v848, %v829
      %856 = vset.pattern.permute.xlu0 1
      %857 = vperm.xlu0 %856, %v832
      %v858 = vpop.permute.xlu0 %857
      %860 = vset.pattern.permute.xlu0 1
      %861 = vperm.xlu0 %860, %v833
      %v862 = vpop.permute.xlu0 %861
      %864 = vset.pattern.permute.xlu0 1
      %865 = vperm.xlu0 %864, %v834
      %v866 = vpop.permute.xlu0 %865
      %v868 = vmul.f32 %v858, %v820
      %v869 = vmul.f32 %v858, %v821
      %v870 = vmul.f32 %v858, %v822
      %v871 = vmul.f32 %v862, %v824
      %v872 = vmul.f32 %v862, %v825
      %v873 = vmul.f32 %v862, %v826
      %v874 = vmul.f32 %v866, %v828
      %v875 = vmul.f32 %v866, %v829
      %v876 = vmul.f32 %v866, %v830
      %886 = vrot.lane.b32.xlu0 %v868, 64
      %v887 = vpop.permute.xlu0 %886
      %888 = vrot.lane.b32.xlu0 %v869, 64
      %v889 = vpop.permute.xlu0 %888
      %890 = vrot.lane.b32.xlu0 %v870, 64
      %v891 = vpop.permute.xlu0 %890
      %892 = vrot.lane.b32.xlu0 %v871, 64
      %v893 = vpop.permute.xlu0 %892
      %894 = vrot.lane.b32.xlu0 %v872, 64
      %v895 = vpop.permute.xlu0 %894
      %896 = vrot.lane.b32.xlu0 %v873, 64
      %v897 = vpop.permute.xlu0 %896
      %898 = vrot.lane.b32.xlu0 %v874, 64
      %v899 = vpop.permute.xlu0 %898
      %900 = vrot.lane.b32.xlu0 %v875, 64
      %v901 = vpop.permute.xlu0 %900
      %902 = vrot.lane.b32.xlu0 %v876, 64
      %v903 = vpop.permute.xlu0 %902
      %v904 = vsel %vm302, %v887, %v889
      %v905 = vsel %vm302, %v889, %v891
      %v906 = vsel %vm302, %v893, %v895
      %v907 = vsel %vm302, %v895, %v897
      %v908 = vsel %vm302, %v899, %v901
      %v909 = vsel %vm302, %v901, %v903
      %v916 = vadd.f32 %v850, %v904
      %v917 = vadd.f32 %v851, %v905
      %v918 = vadd.f32 %v852, %v906
      %v919 = vadd.f32 %v853, %v907
      %v920 = vadd.f32 %v854, %v908
      %v921 = vadd.f32 %v855, %v909
      %922 = vset.pattern.permute.xlu0 2
      %923 = vperm.xlu0 %922, %v832
      %v924 = vpop.permute.xlu0 %923
      %926 = vset.pattern.permute.xlu0 2
      %927 = vperm.xlu0 %926, %v833
      %v928 = vpop.permute.xlu0 %927
      %930 = vset.pattern.permute.xlu0 2
      %931 = vperm.xlu0 %930, %v834
      %v932 = vpop.permute.xlu0 %931
      %v934 = vmul.f32 %v924, %v821
      %v935 = vmul.f32 %v924, %v822
      %v936 = vmul.f32 %v928, %v825
      %v937 = vmul.f32 %v928, %v826
      %v938 = vmul.f32 %v932, %v829
      %v939 = vmul.f32 %v932, %v830
      %v940 = vadd.f32 %v916, %v934
      %v941 = vadd.f32 %v917, %v935
      %v942 = vadd.f32 %v918, %v936
      %v943 = vadd.f32 %v919, %v937
      %v944 = vadd.f32 %v920, %v938
      %v945 = vadd.f32 %v921, %v939
      %946 = vset.pattern.permute.xlu0 3
      %947 = vperm.xlu0 %946, %v832
      %v948 = vpop.permute.xlu0 %947
      %950 = vset.pattern.permute.xlu0 3
      %951 = vperm.xlu0 %950, %v833
      %v952 = vpop.permute.xlu0 %951
      %954 = vset.pattern.permute.xlu0 3
      %955 = vperm.xlu0 %954, %v834
      %v956 = vpop.permute.xlu0 %955
      %v958 = vmul.f32 %v948, %v821
      %v959 = vmul.f32 %v948, %v822
      %v960 = vmul.f32 %v948, %v823
      %v961 = vmul.f32 %v952, %v825
      %v962 = vmul.f32 %v952, %v826
      %v963 = vmul.f32 %v952, %v827
      %v964 = vmul.f32 %v956, %v829
      %v965 = vmul.f32 %v956, %v830
      %v966 = vmul.f32 %v956, %v831
      %976 = vrot.lane.b32.xlu0 %v958, 64
      %v977 = vpop.permute.xlu0 %976
      %978 = vrot.lane.b32.xlu0 %v959, 64
      %v979 = vpop.permute.xlu0 %978
      %980 = vrot.lane.b32.xlu0 %v960, 64
      %v981 = vpop.permute.xlu0 %980
      %982 = vrot.lane.b32.xlu0 %v961, 64
      %v983 = vpop.permute.xlu0 %982
      %984 = vrot.lane.b32.xlu0 %v962, 64
      %v985 = vpop.permute.xlu0 %984
      %986 = vrot.lane.b32.xlu0 %v963, 64
      %v987 = vpop.permute.xlu0 %986
      %988 = vrot.lane.b32.xlu0 %v964, 64
      %v989 = vpop.permute.xlu0 %988
      %990 = vrot.lane.b32.xlu0 %v965, 64
      %v991 = vpop.permute.xlu0 %990
      %992 = vrot.lane.b32.xlu0 %v966, 64
      %v993 = vpop.permute.xlu0 %992
      %v994 = vsel %vm302, %v977, %v979
      %v995 = vsel %vm302, %v979, %v981
      %v996 = vsel %vm302, %v983, %v985
      %v997 = vsel %vm302, %v985, %v987
      %v998 = vsel %vm302, %v989, %v991
      %v999 = vsel %vm302, %v991, %v993
      %v1006 = vadd.f32 %v940, %v994
      %v1007 = vadd.f32 %v941, %v995
      %v1008 = vadd.f32 %v942, %v996
      %v1009 = vadd.f32 %v943, %v997
      %v1010 = vadd.f32 %v944, %v998
      %v1011 = vadd.f32 %v945, %v999
      %1012 = vset.pattern.permute.xlu0 4
      %1013 = vperm.xlu0 %1012, %v832
      %v1014 = vpop.permute.xlu0 %1013
      %1016 = vset.pattern.permute.xlu0 4
      %1017 = vperm.xlu0 %1016, %v833
      %v1018 = vpop.permute.xlu0 %1017
      %1020 = vset.pattern.permute.xlu0 4
      %1021 = vperm.xlu0 %1020, %v834
      %v1022 = vpop.permute.xlu0 %1021
      %v1024 = vmul.f32 %v1014, %v822
      %v1025 = vmul.f32 %v1014, %v823
      %v1026 = vmul.f32 %v1018, %v826
      %v1027 = vmul.f32 %v1018, %v827
      %v1028 = vmul.f32 %v1022, %v830
      %v1029 = vmul.f32 %v1022, %v831
      %v1030 = vadd.f32 %v1006, %v1024
      %v1031 = vadd.f32 %v1007, %v1025
      %v1032 = vadd.f32 %v1008, %v1026
      %v1033 = vadd.f32 %v1009, %v1027
      %v1034 = vadd.f32 %v1010, %v1028
      %v1035 = vadd.f32 %v1011, %v1029
      %v1038 = vrot.slane %v1030, 1
      %v1039 = vrot.slane %v1031, 1
      %v1042 = vadd.f32 %v1030, %v1038
      %v1043 = vadd.f32 %v1031, %v1039
      %v1044 = vrot.slane %v1030, 2
      %v1045 = vrot.slane %v1031, 2
      %v1048 = vadd.f32 %v1042, %v1044
      %v1049 = vadd.f32 %v1043, %v1045
      %v1052 = vcombine.low %v1048, %v1049
      %v1054 = vunpack.c.l.s4 1966171168
      %v1055 = vunpack.c.0.s8 %v1054
      %v1056 = vlaneseq
      %v1057 = vshrl.u32 %v1056, 7
      %v1058 = vsub.s32 %v1055, %v1057
      %v1059 = vrot.slane %v1052, %v1058
      %v1061 = vunpack.c.l.s4 1966171168
      %v1062 = vunpack.c.0.s8 %v1061
      %v1063 = vlaneseq
      %v1064 = vshrl.u32 %v1063, 7
      %v1065 = vsub.s32 %v1062, %v1064
      %v1066 = vrot.slane %v1059, %v1065
      %1068 = vst.msk [vmem:[#allocation3] ss:$8 sm:$0x3] %vm627, %v1066
      %1069 = vst.msk [vmem:[#allocation3] ss:$8 sm:$0x0] %vm627, %v1066
      %v1070 = vcombine.high %v1059, %v1059
      %v1072 = vunpack.c.l.s4 1966171168
      %v1073 = vunpack.c.0.s8 %v1072
      %v1074 = vlaneseq
      %v1075 = vshrl.u32 %v1074, 7
      %v1076 = vsub.s32 %v1073, %v1075
      %v1077 = vrot.slane %v1070, %v1076
      %v1078 = vcombine.high %v1077, %v1077
      %1080 = vst.msk [vmem:[%s636] ss:$8 sm:$0x3] %vm627, %v1078
      %1081 = vst.msk [vmem:[%s636] ss:$8 sm:$0x0] %vm627, %v1078
      %v1084 = vrot.slane %v1032, 2
      %v1085 = vrot.slane %v1033, 2
      %v1088 = vadd.f32 %v1042, %v1084
      %v1089 = vadd.f32 %v1043, %v1085
      %v1092 = vcombine.high %v1088, %v1089
      %v1094 = vunpack.c.l.s4 1966171168
      %v1095 = vunpack.c.0.s8 %v1094
      %v1096 = vlaneseq
      %v1097 = vshrl.u32 %v1096, 7
      %v1098 = vsub.s32 %v1095, %v1097
      %v1099 = vrot.slane %v1092, %v1098
      %v1101 = vunpack.c.l.s4 1966171168
      %v1102 = vunpack.c.0.s8 %v1101
      %v1103 = vlaneseq
      %v1104 = vshrl.u32 %v1103, 7
      %v1105 = vsub.s32 %v1102, %v1104
      %v1106 = vrot.slane %v1099, %v1105
      %v1107 = vcombine.high %v1106, %v1106
      %1109 = vst.msk [vmem:[%s668] ss:$8 sm:$0x3] %vm627, %v1107
      %1110 = vst.msk [vmem:[%s668] ss:$8 sm:$0x0] %vm627, %v1107
      %v1111 = vrot.slane %v1032, 1
      %v1112 = vrot.slane %v1033, 1
      %v1115 = vadd.f32 %v1032, %v1111
      %v1116 = vadd.f32 %v1033, %v1112
      %v1117 = vadd.f32 %v1115, %v1084
      %v1118 = vadd.f32 %v1116, %v1085
      %v1121 = vcombine.low %v1117, %v1118
      %v1123 = vunpack.c.l.s4 1966171168
      %v1124 = vunpack.c.0.s8 %v1123
      %v1125 = vlaneseq
      %v1126 = vshrl.u32 %v1125, 7
      %v1127 = vsub.s32 %v1124, %v1126
      %v1128 = vrot.slane %v1121, %v1127
      %v1129 = vcombine.high %v1128, %v1128
      %v1131 = vunpack.c.l.s4 1966171168
      %v1132 = vunpack.c.0.s8 %v1131
      %v1133 = vlaneseq
      %v1134 = vshrl.u32 %v1133, 7
      %v1135 = vsub.s32 %v1132, %v1134
      %v1136 = vrot.slane %v1129, %v1135
      %1138 = vst.msk [vmem:[%s677] ss:$8 sm:$0x3] %vm627, %v1136
      %1139 = vst.msk [vmem:[%s677] ss:$8 sm:$0x0] %vm627, %v1136
      %v1140 = vcombine.high %v1117, %v1118
      %v1142 = vunpack.c.l.s4 1966171168
      %v1143 = vunpack.c.0.s8 %v1142
      %v1144 = vlaneseq
      %v1145 = vshrl.u32 %v1144, 7
      %v1146 = vsub.s32 %v1143, %v1145
      %v1147 = vrot.slane %v1140, %v1146
      %v1149 = vunpack.c.l.s4 1966171168
      %v1150 = vunpack.c.0.s8 %v1149
      %v1151 = vlaneseq
      %v1152 = vshrl.u32 %v1151, 7
      %v1153 = vsub.s32 %v1150, %v1152
      %v1154 = vrot.slane %v1147, %v1153
      %1156 = vst.msk [vmem:[%s723] ss:$8 sm:$0x3] %vm627, %v1154
      %1157 = vst.msk [vmem:[%s723] ss:$8 sm:$0x0] %vm627, %v1154
      %v1160 = vrot.slane %v1034, 1
      %v1161 = vrot.slane %v1035, 1
      %v1164 = vadd.f32 %v1032, %v1160
      %v1165 = vadd.f32 %v1033, %v1161
      %v1166 = vrot.slane %v1034, 2
      %v1167 = vrot.slane %v1035, 2
      %v1170 = vadd.f32 %v1164, %v1166
      %v1171 = vadd.f32 %v1165, %v1167
      %v1174 = vcombine.high %v1170, %v1171
      %v1176 = vunpack.c.l.s4 1966171168
      %v1177 = vunpack.c.0.s8 %v1176
      %v1178 = vlaneseq
      %v1179 = vshrl.u32 %v1178, 7
      %v1180 = vsub.s32 %v1177, %v1179
      %v1181 = vrot.slane %v1174, %v1180
      %v1182 = vcombine.high %v1181, %v1181
      %v1184 = vunpack.c.l.s4 1966171168
      %v1185 = vunpack.c.0.s8 %v1184
      %v1186 = vlaneseq
      %v1187 = vshrl.u32 %v1186, 7
      %v1188 = vsub.s32 %v1185, %v1187
      %v1189 = vrot.slane %v1182, %v1188
      %v1190 = vcombine.high %v1189, %v1189
      %1192 = vst.msk [vmem:[%s732] ss:$8 sm:$0x3] %vm627, %v1190
      %1193 = vst.msk [vmem:[%s732] ss:$8 sm:$0x0] %vm627, %v1190
      %v1194 = vadd.f32 %v1034, %v1160
      %v1195 = vadd.f32 %v1035, %v1161
      %v1196 = vadd.f32 %v1194, %v1166
      %v1197 = vadd.f32 %v1195, %v1167
      %v1200 = vcombine.low %v1196, %v1197
      %v1202 = vunpack.c.l.s4 1966171168
      %v1203 = vunpack.c.0.s8 %v1202
      %v1204 = vlaneseq
      %v1205 = vshrl.u32 %v1204, 7
      %v1206 = vsub.s32 %v1203, %v1205
      %v1207 = vrot.slane %v1200, %v1206
      %v1209 = vunpack.c.l.s4 1966171168
      %v1210 = vunpack.c.0.s8 %v1209
      %v1211 = vlaneseq
      %v1212 = vshrl.u32 %v1211, 7
      %v1213 = vsub.s32 %v1210, %v1212
      %v1214 = vrot.slane %v1207, %v1213
      %v1215 = vcombine.high %v1214, %v1214
      %1217 = vst.msk [vmem:[%s764] ss:$8 sm:$0x3] %vm627, %v1215
      %1218 = vst.msk [vmem:[%s764] ss:$8 sm:$0x0] %vm627, %v1215
      %v1219 = vcombine.high %v1196, %v1197
      %v1221 = vunpack.c.l.s4 1966171168
      %v1222 = vunpack.c.0.s8 %v1221
      %v1223 = vlaneseq
      %v1224 = vshrl.u32 %v1223, 7
      %v1225 = vsub.s32 %v1222, %v1224
      %v1226 = vrot.slane %v1219, %v1225
      %v1227 = vcombine.high %v1226, %v1226
      %v1229 = vunpack.c.l.s4 1966171168
      %v1230 = vunpack.c.0.s8 %v1229
      %v1231 = vlaneseq
      %v1232 = vshrl.u32 %v1231, 7
      %v1233 = vsub.s32 %v1230, %v1232
      %v1234 = vrot.slane %v1227, %v1233
      %1236 = vst.msk [vmem:[%s773] ss:$8 sm:$0x3] %vm627, %v1234
      %1237 = vst.msk [vmem:[%s773] ss:$8 sm:$0x0] %vm627, %v1234
      %v1238 = vld [vmem:[#allocation3] sm:$0xff]
      %v1239 = vld [vmem:[#allocation3 + $0x8] sm:$0xff]
      %v1240 = vadd.f32 %v1238, %v1239
      %1241 = vadd.xlane.f32.xlu0 %v1240
      %v1242 = vpop.xlane.xlu0 %1241
      %v1243 = vmul.f32 %v1242, 0.00390625
      %v1244 = vsub.f32 %v1238, %v1243
      %v1245 = vsub.f32 %v1239, %v1243
      %v1246 = vmul.f32 %v1244, %v1244
      %v1247 = vmul.f32 %v1245, %v1245
      %v1248 = vadd.f32 %v1246, %v1247
      %1249 = vadd.xlane.f32.xlu0 %v1248
      %v1250 = vpop.xlane.xlu0 %1249
      %v1251 = vmul.f32 %v1250, 0.00390625
      %v1252 = vadd.f32 %v1251, 1e-05
      %v1253 = vrsqrt.pop %v1252
      %v1254 = vmul.f32 %v1244, %v1253
      %v1255 = vmul.f32 %v1245, %v1253
      %v1256 = vld [vmem:[%s2 + $0x10] sm:$0xff]
      %1258 = vset.pattern.permute.xlu0 0
      %1259 = vperm.xlu0 %1258, %v1256
      %v1260 = vpop.permute.xlu0 %1259
      %v1262 = vmul.f32 %v1260, %v1254
      %v1263 = vmul.f32 %v1260, %v1255
      %1264 = vset.pattern.permute.xlu0 1
      %1265 = vperm.xlu0 %1264, %v1256
      %v1266 = vpop.permute.xlu0 %1265
      %v1268 = vadd.f32 %v1262, %v1266
      %v1269 = vadd.f32 %v1263, %v1266
      %vm1270 = vcmp.ge.f32.partialorder %v1268, 0.0
      %vm1271 = vcmp.ge.f32.partialorder %v1269, 0.0
      %1272 = vset.pattern.permute.xlu0 2
      %1273 = vperm.xlu0 %1272, %v1256
      %v1274 = vpop.permute.xlu0 %1273
      %v1276 = vmul.f32 %v1274, %v1268
      %v1277 = vmul.f32 %v1274, %v1269
      %v1278 = vsel %vm1270, %v1268, %v1276
      %v1279 = vsel %vm1271, %v1269, %v1277
      %1280 = vst [vmem:[#allocation2 + $0x10] sm:$0xff] %v1278
      %1281 = vst [vmem:[#allocation2 + $0x18] sm:$0xff] %v1279
      %v1282 = vld [vmem:[#allocation2] sm:$0xff]
      %v1283 = vld [vmem:[#allocation2 + $0x8] sm:$0xff]
      %v1284 = vld [vmem:[#allocation2 + $0x10] sm:$0xff]
      %v1285 = vld [vmem:[#allocation2 + $0x18] sm:$0xff]
      %v1286 = vld [vmem:[#allocation2 + $0x20] sm:$0xff]
      %v1287 = vld [vmem:[#allocation2 + $0x28] sm:$0xff]
      %v1288 = vld [vmem:[#allocation2 + $0x30] sm:$0xff]
      %v1289 = vld [vmem:[#allocation2 + $0x38] sm:$0xff]
      %v1290 = vld [vmem:[#allocation2 + $0x40] sm:$0xff]
      %v1291 = vld [vmem:[#allocation2 + $0x48] sm:$0xff]
      %v1292 = vld [vmem:[#allocation2 + $0x50] sm:$0xff]
      %v1293 = vld [vmem:[#allocation2 + $0x58] sm:$0xff]
      %v1294 = vld [vmem:[#allocation2 + $0x60] sm:$0xff]
      %v1295 = vld [vmem:[#allocation2 + $0x68] sm:$0xff]
      %v1296 = vld [vmem:[#allocation2 + $0x70] sm:$0xff]
      %v1297 = vld [vmem:[#allocation2 + $0x78] sm:$0xff]
      %v1298 = vld [vmem:[#allocation2 + $0x80] sm:$0xff]
      %v1299 = vld [vmem:[#allocation2 + $0x88] sm:$0xff]
      %v1300 = vld [vmem:[#allocation2 + $0x90] sm:$0xff]
      %v1301 = vld [vmem:[#allocation2 + $0x98] sm:$0xff]
      %v1302 = vld [vmem:[#allocation2 + $0xa0] sm:$0xff]
      %v1303 = vld [vmem:[#allocation2 + $0xa8] sm:$0xff]
      %v1304 = vld [vmem:[#allocation2 + $0xb0] sm:$0xff]
      %v1305 = vld [vmem:[#allocation2 + $0xb8] sm:$0xff]
      %v1306 = vld [vmem:[%s1 + $0x30] sm:$0xff]
      %v1307 = vld [vmem:[%s1 + $0x38] sm:$0xff]
      %v1308 = vld [vmem:[%s1 + $0x40] sm:$0xff]
      %v1309 = vld [vmem:[%s1 + $0x48] sm:$0xff]
      %1311 = vset.pattern.permute.xlu0 0
      %1312 = vperm.xlu0 %1311, %v1306
      %v1313 = vpop.permute.xlu0 %1312
      %1316 = vset.pattern.permute.xlu0 0
      %1317 = vperm.xlu0 %1316, %v1307
      %v1318 = vpop.permute.xlu0 %1317
      %1321 = vset.pattern.permute.xlu0 0
      %1322 = vperm.xlu0 %1321, %v1308
      %v1323 = vpop.permute.xlu0 %1322
      %1326 = vset.pattern.permute.xlu0 0
      %1327 = vperm.xlu0 %1326, %v1309
      %v1328 = vpop.permute.xlu0 %1327
      %v1330 = vmul.f32 %v1313, %v1282
      %v1331 = vmul.f32 %v1313, %v1283
      %v1332 = vmul.f32 %v1318, %v1288
      %v1333 = vmul.f32 %v1318, %v1289
      %v1334 = vmul.f32 %v1323, %v1294
      %v1335 = vmul.f32 %v1323, %v1295
      %v1336 = vmul.f32 %v1328, %v1300
      %v1337 = vmul.f32 %v1328, %v1301
      %1338 = vset.pattern.permute.xlu0 1
      %1339 = vperm.xlu0 %1338, %v1306
      %v1340 = vpop.permute.xlu0 %1339
      %1342 = vset.pattern.permute.xlu0 1
      %1343 = vperm.xlu0 %1342, %v1307
      %v1344 = vpop.permute.xlu0 %1343
      %1346 = vset.pattern.permute.xlu0 1
      %1347 = vperm.xlu0 %1346, %v1308
      %v1348 = vpop.permute.xlu0 %1347
      %1350 = vset.pattern.permute.xlu0 1
      %1351 = vperm.xlu0 %1350, %v1309
      %v1352 = vpop.permute.xlu0 %1351
      %v1354 = vmul.f32 %v1340, %v1283
      %v1355 = vmul.f32 %v1340, %v1284
      %v1356 = vmul.f32 %v1344, %v1289
      %v1357 = vmul.f32 %v1344, %v1290
      %v1358 = vmul.f32 %v1348, %v1295
      %v1359 = vmul.f32 %v1348, %v1296
      %v1360 = vmul.f32 %v1352, %v1301
      %v1361 = vmul.f32 %v1352, %v1302
      %v1362 = vadd.f32 %v1330, %v1354
      %v1363 = vadd.f32 %v1331, %v1355
      %v1364 = vadd.f32 %v1332, %v1356
      %v1365 = vadd.f32 %v1333, %v1357
      %v1366 = vadd.f32 %v1334, %v1358
      %v1367 = vadd.f32 %v1335, %v1359
      %v1368 = vadd.f32 %v1336, %v1360
      %v1369 = vadd.f32 %v1337, %v1361
      %1370 = vset.pattern.permute.xlu0 2
      %1371 = vperm.xlu0 %1370, %v1306
      %v1372 = vpop.permute.xlu0 %1371
      %1374 = vset.pattern.permute.xlu0 2
      %1375 = vperm.xlu0 %1374, %v1307
      %v1376 = vpop.permute.xlu0 %1375
      %1378 = vset.pattern.permute.xlu0 2
      %1379 = vperm.xlu0 %1378, %v1308
      %v1380 = vpop.permute.xlu0 %1379
      %1382 = vset.pattern.permute.xlu0 2
      %1383 = vperm.xlu0 %1382, %v1309
      %v1384 = vpop.permute.xlu0 %1383
      %v1386 = vmul.f32 %v1372, %v1284
      %v1387 = vmul.f32 %v1372, %v1285
      %v1388 = vmul.f32 %v1376, %v1290
      %v1389 = vmul.f32 %v1376, %v1291
      %v1390 = vmul.f32 %v1380, %v1296
      %v1391 = vmul.f32 %v1380, %v1297
      %v1392 = vmul.f32 %v1384, %v1302
      %v1393 = vmul.f32 %v1384, %v1303
      %v1394 = vadd.f32 %v1362, %v1386
      %v1395 = vadd.f32 %v1363, %v1387
      %v1396 = vadd.f32 %v1364, %v1388
      %v1397 = vadd.f32 %v1365, %v1389
      %v1398 = vadd.f32 %v1366, %v1390
      %v1399 = vadd.f32 %v1367, %v1391
      %v1400 = vadd.f32 %v1368, %v1392
      %v1401 = vadd.f32 %v1369, %v1393
      %1402 = vset.pattern.permute.xlu0 3
      %1403 = vperm.xlu0 %1402, %v1306
      %v1404 = vpop.permute.xlu0 %1403
      %1406 = vset.pattern.permute.xlu0 3
      %1407 = vperm.xlu0 %1406, %v1307
      %v1408 = vpop.permute.xlu0 %1407
      %1410 = vset.pattern.permute.xlu0 3
      %1411 = vperm.xlu0 %1410, %v1308
      %v1412 = vpop.permute.xlu0 %1411
      %1414 = vset.pattern.permute.xlu0 3
      %1415 = vperm.xlu0 %1414, %v1309
      %v1416 = vpop.permute.xlu0 %1415
      %v1418 = vmul.f32 %v1404, %v1285
      %v1419 = vmul.f32 %v1404, %v1286
      %v1420 = vmul.f32 %v1408, %v1291
      %v1421 = vmul.f32 %v1408, %v1292
      %v1422 = vmul.f32 %v1412, %v1297
      %v1423 = vmul.f32 %v1412, %v1298
      %v1424 = vmul.f32 %v1416, %v1303
      %v1425 = vmul.f32 %v1416, %v1304
      %v1426 = vadd.f32 %v1394, %v1418
      %v1427 = vadd.f32 %v1395, %v1419
      %v1428 = vadd.f32 %v1396, %v1420
      %v1429 = vadd.f32 %v1397, %v1421
      %v1430 = vadd.f32 %v1398, %v1422
      %v1431 = vadd.f32 %v1399, %v1423
      %v1432 = vadd.f32 %v1400, %v1424
      %v1433 = vadd.f32 %v1401, %v1425
      %1434 = vset.pattern.permute.xlu0 4
      %1435 = vperm.xlu0 %1434, %v1306
      %v1436 = vpop.permute.xlu0 %1435
      %1438 = vset.pattern.permute.xlu0 4
      %1439 = vperm.xlu0 %1438, %v1307
      %v1440 = vpop.permute.xlu0 %1439
      %1442 = vset.pattern.permute.xlu0 4
      %1443 = vperm.xlu0 %1442, %v1308
      %v1444 = vpop.permute.xlu0 %1443
      %1446 = vset.pattern.permute.xlu0 4
      %1447 = vperm.xlu0 %1446, %v1309
      %v1448 = vpop.permute.xlu0 %1447
      %v1450 = vmul.f32 %v1436, %v1286
      %v1451 = vmul.f32 %v1436, %v1287
      %v1452 = vmul.f32 %v1440, %v1292
      %v1453 = vmul.f32 %v1440, %v1293
      %v1454 = vmul.f32 %v1444, %v1298
      %v1455 = vmul.f32 %v1444, %v1299
      %v1456 = vmul.f32 %v1448, %v1304
      %v1457 = vmul.f32 %v1448, %v1305
      %v1458 = vadd.f32 %v1426, %v1450
      %v1459 = vadd.f32 %v1427, %v1451
      %v1460 = vadd.f32 %v1428, %v1452
      %v1461 = vadd.f32 %v1429, %v1453
      %v1462 = vadd.f32 %v1430, %v1454
      %v1463 = vadd.f32 %v1431, %v1455
      %v1464 = vadd.f32 %v1432, %v1456
      %v1465 = vadd.f32 %v1433, %v1457
      %v1468 = vrot.slane %v1458, 1
      %v1469 = vrot.slane %v1459, 1
      %v1472 = vadd.f32 %v1458, %v1468
      %v1473 = vadd.f32 %v1459, %v1469
      %v1474 = vrot.slane %v1458, 2
      %v1475 = vrot.slane %v1459, 2
      %v1478 = vadd.f32 %v1472, %v1474
      %v1479 = vadd.f32 %v1473, %v1475
      %v1480 = vrot.slane %v1458, 3
      %v1481 = vrot.slane %v1459, 3
      %v1484 = vadd.f32 %v1478, %v1480
      %v1485 = vadd.f32 %v1479, %v1481
      %v1488 = vcombine.low %v1484, %v1485
      %v1490 = vunpack.c.l.s4 1966171168
      %v1491 = vunpack.c.0.s8 %v1490
      %v1492 = vlaneseq
      %v1493 = vshrl.u32 %v1492, 7
      %v1494 = vsub.s32 %v1491, %v1493
      %v1495 = vrot.slane %v1488, %v1494
      %v1497 = vunpack.c.l.s4 1966171168
      %v1498 = vunpack.c.0.s8 %v1497
      %v1499 = vlaneseq
      %v1500 = vshrl.u32 %v1499, 7
      %v1501 = vsub.s32 %v1498, %v1500
      %v1502 = vrot.slane %v1495, %v1501
      %1504 = vst.msk [vmem:[#allocation3] ss:$8 sm:$0x3] %vm627, %v1502
      %1505 = vst.msk [vmem:[#allocation3] ss:$8 sm:$0x0] %vm627, %v1502
      %v1506 = vcombine.high %v1484, %v1485
      %v1508 = vunpack.c.l.s4 1966171168
      %v1509 = vunpack.c.0.s8 %v1508
      %v1510 = vlaneseq
      %v1511 = vshrl.u32 %v1510, 7
      %v1512 = vsub.s32 %v1509, %v1511
      %v1513 = vrot.slane %v1506, %v1512
      %v1515 = vunpack.c.l.s4 1966171168
      %v1516 = vunpack.c.0.s8 %v1515
      %v1517 = vlaneseq
      %v1518 = vshrl.u32 %v1517, 7
      %v1519 = vsub.s32 %v1516, %v1518
      %v1520 = vrot.slane %v1513, %v1519
      %1522 = vst.msk [vmem:[%s636] ss:$8 sm:$0x3] %vm627, %v1520
      %1523 = vst.msk [vmem:[%s636] ss:$8 sm:$0x0] %vm627, %v1520
      %v1526 = vrot.slane %v1460, 1
      %v1527 = vrot.slane %v1461, 1
      %v1530 = vadd.f32 %v1460, %v1526
      %v1531 = vadd.f32 %v1461, %v1527
      %v1532 = vrot.slane %v1460, 2
      %v1533 = vrot.slane %v1461, 2
      %v1536 = vadd.f32 %v1530, %v1532
      %v1537 = vadd.f32 %v1531, %v1533
      %v1538 = vrot.slane %v1460, 3
      %v1539 = vrot.slane %v1461, 3
      %v1542 = vadd.f32 %v1536, %v1538
      %v1543 = vadd.f32 %v1537, %v1539
      %v1546 = vcombine.low %v1542, %v1543
      %v1548 = vunpack.c.l.s4 1966171168
      %v1549 = vunpack.c.0.s8 %v1548
      %v1550 = vlaneseq
      %v1551 = vshrl.u32 %v1550, 7
      %v1552 = vsub.s32 %v1549, %v1551
      %v1553 = vrot.slane %v1546, %v1552
      %v1555 = vunpack.c.l.s4 1966171168
      %v1556 = vunpack.c.0.s8 %v1555
      %v1557 = vlaneseq
      %v1558 = vshrl.u32 %v1557, 7
      %v1559 = vsub.s32 %v1556, %v1558
      %v1560 = vrot.slane %v1553, %v1559
      %1562 = vst.msk [vmem:[%s668] ss:$8 sm:$0x3] %vm627, %v1560
      %1563 = vst.msk [vmem:[%s668] ss:$8 sm:$0x0] %vm627, %v1560
      %v1564 = vcombine.high %v1542, %v1543
      %v1566 = vunpack.c.l.s4 1966171168
      %v1567 = vunpack.c.0.s8 %v1566
      %v1568 = vlaneseq
      %v1569 = vshrl.u32 %v1568, 7
      %v1570 = vsub.s32 %v1567, %v1569
      %v1571 = vrot.slane %v1564, %v1570
      %v1573 = vunpack.c.l.s4 1966171168
      %v1574 = vunpack.c.0.s8 %v1573
      %v1575 = vlaneseq
      %v1576 = vshrl.u32 %v1575, 7
      %v1577 = vsub.s32 %v1574, %v1576
      %v1578 = vrot.slane %v1571, %v1577
      %1580 = vst.msk [vmem:[%s677] ss:$8 sm:$0x3] %vm627, %v1578
      %1581 = vst.msk [vmem:[%s677] ss:$8 sm:$0x0] %vm627, %v1578
      %v1584 = vrot.slane %v1462, 1
      %v1585 = vrot.slane %v1463, 1
      %v1588 = vadd.f32 %v1462, %v1584
      %v1589 = vadd.f32 %v1463, %v1585
      %v1590 = vrot.slane %v1462, 2
      %v1591 = vrot.slane %v1463, 2
      %v1594 = vadd.f32 %v1588, %v1590
      %v1595 = vadd.f32 %v1589, %v1591
      %v1596 = vrot.slane %v1462, 3
      %v1597 = vrot.slane %v1463, 3
      %v1600 = vadd.f32 %v1594, %v1596
      %v1601 = vadd.f32 %v1595, %v1597
      %v1604 = vcombine.low %v1600, %v1601
      %v1606 = vunpack.c.l.s4 1966171168
      %v1607 = vunpack.c.0.s8 %v1606
      %v1608 = vlaneseq
      %v1609 = vshrl.u32 %v1608, 7
      %v1610 = vsub.s32 %v1607, %v1609
      %v1611 = vrot.slane %v1604, %v1610
      %v1613 = vunpack.c.l.s4 1966171168
      %v1614 = vunpack.c.0.s8 %v1613
      %v1615 = vlaneseq
      %v1616 = vshrl.u32 %v1615, 7
      %v1617 = vsub.s32 %v1614, %v1616
      %v1618 = vrot.slane %v1611, %v1617
      %1620 = vst.msk [vmem:[%s723] ss:$8 sm:$0x3] %vm627, %v1618
      %1621 = vst.msk [vmem:[%s723] ss:$8 sm:$0x0] %vm627, %v1618
      %v1622 = vcombine.high %v1600, %v1601
      %v1624 = vunpack.c.l.s4 1966171168
      %v1625 = vunpack.c.0.s8 %v1624
      %v1626 = vlaneseq
      %v1627 = vshrl.u32 %v1626, 7
      %v1628 = vsub.s32 %v1625, %v1627
      %v1629 = vrot.slane %v1622, %v1628
      %v1631 = vunpack.c.l.s4 1966171168
      %v1632 = vunpack.c.0.s8 %v1631
      %v1633 = vlaneseq
      %v1634 = vshrl.u32 %v1633, 7
      %v1635 = vsub.s32 %v1632, %v1634
      %v1636 = vrot.slane %v1629, %v1635
      %1638 = vst.msk [vmem:[%s732] ss:$8 sm:$0x3] %vm627, %v1636
      %1639 = vst.msk [vmem:[%s732] ss:$8 sm:$0x0] %vm627, %v1636
      %v1642 = vrot.slane %v1464, 1
      %v1643 = vrot.slane %v1465, 1
      %v1646 = vadd.f32 %v1464, %v1642
      %v1647 = vadd.f32 %v1465, %v1643
      %v1648 = vrot.slane %v1464, 2
      %v1649 = vrot.slane %v1465, 2
      %v1652 = vadd.f32 %v1646, %v1648
      %v1653 = vadd.f32 %v1647, %v1649
      %v1654 = vrot.slane %v1464, 3
      %v1655 = vrot.slane %v1465, 3
      %v1658 = vadd.f32 %v1652, %v1654
      %v1659 = vadd.f32 %v1653, %v1655
      %v1662 = vcombine.low %v1658, %v1659
      %v1664 = vunpack.c.l.s4 1966171168
      %v1665 = vunpack.c.0.s8 %v1664
      %v1666 = vlaneseq
      %v1667 = vshrl.u32 %v1666, 7
      %v1668 = vsub.s32 %v1665, %v1667
      %v1669 = vrot.slane %v1662, %v1668
      %v1671 = vunpack.c.l.s4 1966171168
      %v1672 = vunpack.c.0.s8 %v1671
      %v1673 = vlaneseq
      %v1674 = vshrl.u32 %v1673, 7
      %v1675 = vsub.s32 %v1672, %v1674
      %v1676 = vrot.slane %v1669, %v1675
      %1678 = vst.msk [vmem:[%s764] ss:$8 sm:$0x3] %vm627, %v1676
      %1679 = vst.msk [vmem:[%s764] ss:$8 sm:$0x0] %vm627, %v1676
      %v1680 = vcombine.high %v1658, %v1659
      %v1682 = vunpack.c.l.s4 1966171168
      %v1683 = vunpack.c.0.s8 %v1682
      %v1684 = vlaneseq
      %v1685 = vshrl.u32 %v1684, 7
      %v1686 = vsub.s32 %v1683, %v1685
      %v1687 = vrot.slane %v1680, %v1686
      %v1689 = vunpack.c.l.s4 1966171168
      %v1690 = vunpack.c.0.s8 %v1689
      %v1691 = vlaneseq
      %v1692 = vshrl.u32 %v1691, 7
      %v1693 = vsub.s32 %v1690, %v1692
      %v1694 = vrot.slane %v1687, %v1693
      %1696 = vst.msk [vmem:[%s773] ss:$8 sm:$0x3] %vm627, %v1694
      %1697 = vst.msk [vmem:[%s773] ss:$8 sm:$0x0] %vm627, %v1694
      %v1698 = vld [vmem:[#allocation3] sm:$0xff]
      %v1699 = vld [vmem:[#allocation3 + $0x8] sm:$0xff]
      %v1700 = vadd.f32 %v1698, %v1699
      %1701 = vadd.xlane.f32.xlu0 %v1700
      %v1702 = vpop.xlane.xlu0 %1701
      %v1703 = vmul.f32 %v1702, 0.00390625
      %v1704 = vsub.f32 %v1698, %v1703
      %v1705 = vsub.f32 %v1699, %v1703
      %v1706 = vmul.f32 %v1704, %v1704
      %v1707 = vmul.f32 %v1705, %v1705
      %v1708 = vadd.f32 %v1706, %v1707
      %1709 = vadd.xlane.f32.xlu0 %v1708
      %v1710 = vpop.xlane.xlu0 %1709
      %v1711 = vmul.f32 %v1710, 0.00390625
      %v1712 = vadd.f32 %v1711, 1e-05
      %v1713 = vrsqrt.pop %v1712
      %v1714 = vmul.f32 %v1704, %v1713
      %v1715 = vmul.f32 %v1705, %v1713
      %v1716 = vld [vmem:[%s2 + $0x18] sm:$0xff]
      %1718 = vset.pattern.permute.xlu0 0
      %1719 = vperm.xlu0 %1718, %v1716
      %v1720 = vpop.permute.xlu0 %1719
      %v1722 = vmul.f32 %v1720, %v1714
      %v1723 = vmul.f32 %v1720, %v1715
      %1724 = vset.pattern.permute.xlu0 1
      %1725 = vperm.xlu0 %1724, %v1716
      %v1726 = vpop.permute.xlu0 %1725
      %v1728 = vadd.f32 %v1722, %v1726
      %v1729 = vadd.f32 %v1723, %v1726
      %vm1730 = vcmp.ge.f32.partialorder %v1728, 0.0
      %vm1731 = vcmp.ge.f32.partialorder %v1729, 0.0
      %1732 = vset.pattern.permute.xlu0 2
      %1733 = vperm.xlu0 %1732, %v1716
      %v1734 = vpop.permute.xlu0 %1733
      %v1736 = vmul.f32 %v1734, %v1728
      %v1737 = vmul.f32 %v1734, %v1729
      %v1738 = vsel %vm1730, %v1728, %v1736
      %v1739 = vsel %vm1731, %v1729, %v1737
      %1740 = vst [vmem:[%s170] sm:$0xff] %v1738
      %1741 = vst [vmem:[%s170 + $0x8] sm:$0xff] %v1739
      %p1742 = scmp.lt.s32.totalorder %s14, 1
      %s1743 = scalar_select %p1742, %s14, 1
      %s1744 = smul.addr %s1743, 2
      %s1745 = smul.addr %s1744, 8
      %s1746 = scalar_lea.vmem %s3, %s1745
      // Predicated region
      $region37: #{dilated_dense_net.1} parent=31 // pred_check
        %p1747 = pneg %p100
      $region38: #{dilated_dense_net.1} parent=31 // pred_check_branch
        %1749 = sbr.rel (%p1747) target = $region40
      $region39: #{dilated_dense_net.1} parent=31 // pred_region
        _
      $region40: #{dilated_dense_net.1} parent=31 // pred_fallthru
        _
    $region32: #{dilated_dense_net.1} parent=5 // pred_fallthru
      _
    %p1750 = scmp.le.s32.totalorder 2, %s9
    // Predicated region
    $region41: #{dilated_dense_net.1} parent=5 // pred_check
      %p1751 = pneg %p1750
    $region42: #{dilated_dense_net.1} parent=5 // pred_check_branch
      %1753 = sbr.rel (%p1751) target = $region44
    $region43: #{dilated_dense_net.1} parent=5 // pred_region
      %s1754 = ssub.s32 %s9, 2
      // Predicated region
      $region45: #{dilated_dense_net.1} parent=43 // pred_check
        %p1755 = pneg %p106
      $region46: #{dilated_dense_net.1} parent=43 // pred_check_branch
        %1757 = sbr.rel (%p1755) target = $region48
      $region47: #{dilated_dense_net.1} parent=43 // pred_region
        %p1758 = scmp.lt.s32.totalorder %s15, 1
        %s1759 = scalar_select %p1758, %s15, 1
        %s1760 = smul.addr %s1759, 2
        %s1761 = smul.addr %s1760, 8
        %s1762 = scalar_lea.vmem %s3, %s1761
      $region48: #{dilated_dense_net.1} parent=43 // pred_fallthru
        _
    $region44: #{dilated_dense_net.1} parent=5 // pred_fallthru
      _
  $region6: #{dilated_dense_net.1} parent=0 // loop_footer
    %s13 = sadd.s32 1, %s9
  $region7: #{dilated_dense_net.1} parent=0 // loop_footer_branch
    %8 = sbr.rel target = $region3
  $region8: #{dilated_dense_net.1} parent=0 // loop_exit
    _

</llo_original>
